<compile_context>
chip_gen: v7x
topology: tpu7x:2x2x1
jax: 0.10.0
libtpu: 0.0.40
codegen_flags: <defaults>
</compile_context>

<pallas_src>
import math
import functools

import jax
import jax.numpy as jnp
from jax.experimental import pallas as pl
from jax.experimental.pallas import tpu as pltpu


# ------------------------------------------------------------------ RoPE glue
def precompute_rope(head_dim, theta_base=10000.0, context_length=4096):
    """JAX port of precompute_rope_params (freq_config=None)."""
    inv_freq = 1.0 / theta_base ** (
        jnp.arange(0, head_dim, 2)[: head_dim // 2].astype(jnp.float32) / head_dim
    )
    positions = jnp.arange(context_length, dtype=jnp.float32)
    angles = positions[:, None] * inv_freq[None, :]
    angles = jnp.concatenate([angles, angles], axis=1)  # (ctx, head_dim)
    return jnp.cos(angles), jnp.sin(angles)


def rope_rotation_matrix(num_heads, head_dim):
    """R such that (x @ R) == per-head concat([-x2, x1]) rotation of x (S, H)."""
    half = head_dim // 2
    r = jnp.zeros((head_dim, head_dim), jnp.float32)
    idx = jnp.arange(half)
    r = r.at[half + idx, idx].set(-1.0)   # rot[:, :half]  = -x[:, half:]
    r = r.at[idx, half + idx].set(1.0)    # rot[:, half:]  =  x[:, :half]
    return jnp.kron(jnp.eye(num_heads, dtype=jnp.float32), r)  # block-diag


# ------------------------------------------------------------------ kernel
def block_kernel(
    x_ref, rms1_ref, wq_ref, wkv_ref, wo_ref,
    cosq_ref, sinq_ref, cosk_ref, sink_ref,
    rms2_ref, wf12_ref, wf3_ref,
    o_ref, ctx_ref, *, num_heads, head_dim, q_tile,
):
    S, H = x_ref.shape
    TQ = q_tile
    eps = 1e-5
    qi = pl.program_id(1)
    row0 = pl.multiple_of(qi * TQ, TQ)

    # ---- RMSNorm 1 (f32) --------------------------------------------------
    x_full = x_ref[...]                                   # (S, H) f32
    ms = jnp.mean(x_full * x_full, axis=-1, keepdims=True)
    xn_full = x_full * jax.lax.rsqrt(ms + eps) * rms1_ref[0]

    x_tile = x_ref[pl.ds(row0, TQ), :]                    # (TQ, H) residual rows
    ms_t = jnp.mean(x_tile * x_tile, axis=-1, keepdims=True)
    xn_tile = x_tile * jax.lax.rsqrt(ms_t + eps) * rms1_ref[0]

    # ---- fused projections (bf16 MXU operands, f32 accumulation) -----------
    kv = jnp.dot(xn_full.astype(jnp.bfloat16), wkv_ref[...],
                 preferred_element_type=jnp.float32)      # (S, 3H) = [K | K@R | V]
    qq = jnp.dot(xn_tile.astype(jnp.bfloat16), wq_ref[...],
                 preferred_element_type=jnp.float32)      # (TQ, 2H) = [Q | Q@R]

    # RoPE folded into weights; sqrt(head_dim) scale folded into cosq/sinq.
    q_rope = qq[:, :H] * cosq_ref[...] + qq[:, H:] * sinq_ref[...]        # (TQ, H)
    k_rope = kv[:, :H] * cosk_ref[...] + kv[:, H:2 * H] * sink_ref[...]   # (S,  H)
    v_full = kv[:, 2 * H:]                                                # (S,  H)

    # ---- causal attention for this query tile ------------------------------
    rows = row0 + jax.lax.broadcasted_iota(jnp.int32, (TQ, S), 0)
    cols = jax.lax.broadcasted_iota(jnp.int32, (TQ, S), 1)
    mask = cols > rows
    neg_big = jnp.float32(-1e30)   # finite fill: NaN-safe even if a row were fully masked

    for h in range(num_heads):     # static unroll; lane-aligned when head_dim % 128 == 0
        sl = slice(h * head_dim, (h + 1) * head_dim)
        qh = q_rope[:, sl].astype(jnp.bfloat16)           # (TQ, hd)
        kh = k_rope[:, sl].astype(jnp.bfloat16)           # (S,  hd)
        vh = v_full[:, sl].astype(jnp.bfloat16)           # (S,  hd)

        scores = jax.lax.dot_general(                     # q @ k.T, already *sqrt(hd)
            qh, kh, (((1,), (1,)), ((), ())),
            preferred_element_type=jnp.float32)           # (TQ, S)
        scores = jnp.where(mask, neg_big, scores)
        m = jnp.max(scores, axis=-1, keepdims=True)
        p = jnp.exp(scores - m)
        p = p * pl.reciprocal(jnp.sum(p, axis=-1, keepdims=True), approx=True)

        ctx_ref[:, sl] = jnp.dot(p.astype(jnp.bfloat16), vh,
                                 preferred_element_type=jnp.float32
                                 ).astype(jnp.bfloat16)   # write into scratch slab

    attn = jnp.dot(ctx_ref[...], wo_ref[...], preferred_element_type=jnp.float32)
    x1 = x_tile + attn                                    # residual 1 (f32)

    # ---- RMSNorm 2 + SwiGLU FFN (fused gate/up) ----------------------------
    ms2 = jnp.mean(x1 * x1, axis=-1, keepdims=True)
    xn2 = x1 * jax.lax.rsqrt(ms2 + eps) * rms2_ref[0]
    gu = jnp.dot(xn2.astype(jnp.bfloat16), wf12_ref[...],
                 preferred_element_type=jnp.float32)      # (TQ, 2H) = [fc1 | fc2]
    g = gu[:, :H]
    hidden = (g * jax.nn.sigmoid(g)) * gu[:, H:]          # SiLU(fc1) * fc2, f32
    ff = jnp.dot(hidden.astype(jnp.bfloat16), wf3_ref[...],
                 preferred_element_type=jnp.float32)

    o_ref[...] = (ff + x1).astype(o_ref.dtype)            # residual 2


# ------------------------------------------------------------------ wrapper
def block_forward(x, params, cos, sin, *, num_heads, q_tile=None):
    B, S, H = x.shape
    head_dim = H // num_heads
    if q_tile is None:
        q_tile = S
    assert S % q_tile == 0 and (q_tile % 8 == 0 or q_tile == S)
    n_qt = S // q_tile

    bf16 = jnp.bfloat16
    R = rope_rotation_matrix(num_heads, head_dim)
    # Fused + RoPE-folded weights (done once per call; cache in real use).
    wq2 = jnp.concatenate([params["wq"], params["wq"] @ R], axis=1).astype(bf16)
    wkv3 = jnp.concatenate(
        [params["wk"], params["wk"] @ R, params["wv"]], axis=1).astype(bf16)
    wo = params["wo"].astype(bf16)
    wf12 = jnp.concatenate([params["wf1"], params["wf2"]], axis=1).astype(bf16)
    wf3 = params["wf3"].astype(bf16)

    # Head-tiled cos/sin tables (f32); sqrt(head_dim) quirk folded into q tables.
    scale = math.sqrt(head_dim)
    cos_t = jnp.tile(cos[:S].astype(jnp.float32), (1, num_heads))   # (S, H)
    sin_t = jnp.tile(sin[:S].astype(jnp.float32), (1, num_heads))   # (S, H)
    cosq, sinq = cos_t * scale, sin_t * scale
    cosk, sink = cos_t, sin_t

    kernel = functools.partial(block_kernel, num_heads=num_heads,
                               head_dim=head_dim, q_tile=q_tile)

    def const_spec(shape):
        return pl.BlockSpec(shape, lambda b, qi: (0, 0))

    return pl.pallas_call(
        kernel,
        out_shape=jax.ShapeDtypeStruct((B, S, H), x.dtype),
        grid_spec=pltpu.PrefetchScalarGridSpec(
            num_scalar_prefetch=0,
            grid=(B, n_qt),
            in_specs=[
                pl.BlockSpec((None, S, H), lambda b, qi: (b, 0, 0)),   # x (full seq, batch b)
                const_spec((1, H)),                                    # rmsnorm1 weight
                const_spec((H, 2 * H)),                                # [Wq | Wq@R]
                const_spec((H, 3 * H)),                                # [Wk | Wk@R | Wv]
                const_spec((H, H)),                                    # Wo
                pl.BlockSpec((q_tile, H), lambda b, qi: (qi, 0)),      # cos_q (scaled)
                pl.BlockSpec((q_tile, H), lambda b, qi: (qi, 0)),      # sin_q (scaled)
                const_spec((S, H)),                                    # cos_k
                const_spec((S, H)),                                    # sin_k
                const_spec((1, H)),                                    # rmsnorm2 weight
                const_spec((H, 2 * H)),                                # [Wfc1 | Wfc2]
                const_spec((H, H)),                                    # Wfc3
            ],
            out_specs=pl.BlockSpec((None, q_tile, H), lambda b, qi: (b, qi, 0)),
            scratch_shapes=[pltpu.VMEM((q_tile, H), jnp.bfloat16)],    # context slab
        ),
        compiler_params=pltpu.CompilerParams(
            dimension_semantics=("parallel", "parallel")),
    )(x, params["rms1"], wq2, wkv3, wo, cosq, sinq, cosk, sink,
      params["rms2"], wf12, wf3)


# ------------------------------------------------------------------ reference
def reference_block(x, params, cos, sin, *, num_heads):
    """Pure-JAX (f32) transcription of the PyTorch Block.forward."""
    B, S, H = x.shape
    hd = H // num_heads
    eps = 1e-5

    def rms(y, w):
        return y * jax.lax.rsqrt(jnp.mean(y * y, -1, keepdims=True) + eps) * w

    xn = rms(x, params["rms1"][0])
    q = xn @ params["wq"]
    k = xn @ params["wk"]
    v = xn @ params["wv"]

    def split(t):
        return t.reshape(B, S, num_heads, hd).transpose(0, 2, 1, 3)

    qh, kh, vh = split(q), split(k), split(v)

    def rope4(t):
        x1 = t[..., : hd // 2]
        x2 = t[..., hd // 2:]
        rot = jnp.concatenate([-x2, x1], axis=-1)
        return t * cos[None, None] + rot * sin[None, None]

    qh, kh = rope4(qh), rope4(kh)
    scores = jnp.einsum("bhqd,bhkd->bhqk", qh, kh) * math.sqrt(hd)
    mask = jnp.triu(jnp.ones((S, S), bool), 1)
    scores = jnp.where(mask, -jnp.inf, scores)
    p = jax.nn.softmax(scores, axis=-1)
    ctx = jnp.einsum("bhqk,bhkd->bhqd", p, vh).transpose(0, 2, 1, 3).reshape(B, S, H)
    attn = ctx @ params["wo"]
    x1r = x + attn

    xn2 = rms(x1r, params["rms2"][0])
    h1 = xn2 @ params["wf1"]
    h2 = xn2 @ params["wf2"]
    ff = (jax.nn.silu(h1) * h2) @ params["wf3"]
    return ff + x1r


# ------------------------------------------------------------------ main
if __name__ == "__main__":
    B, S, H = 2, 16, 32
    num_heads = 4
    head_dim = H // num_heads
    context_length = 32
    q_tile = 8                      # -> grid (B, 2): exercises the seq-tile axis

    key = jax.random.PRNGKey(0)
    keys = jax.random.split(key, 10)

    def w(k):
        # pre-transposed linear weight (in_features, out_features), no bias
        return jax.random.normal(k, (H, H), jnp.float32) * 0.05

    params = {
        "rms1": 1.0 + 0.1 * jax.random.normal(keys[0], (1, H), jnp.float32),
        "wq": w(keys[1]),
        "wk": w(keys[2]),
        "wv": w(keys[3]),
        "wo": w(keys[4]),
        "rms2": 1.0 + 0.1 * jax.random.normal(keys[5], (1, H), jnp.float32),
        "wf1": w(keys[6]),
        "wf2": w(keys[7]),
        "wf3": w(keys[8]),
    }

    x = jax.random.normal(keys[9], (B, S, H), jnp.float32)

    cos_full, sin_full = precompute_rope(head_dim, 10000.0, context_length)
    cos, sin = cos_full[:S].astype(jnp.float32), sin_full[:S].astype(jnp.float32)

    out = block_forward(x, params, cos, sin, num_heads=num_heads, q_tile=q_tile)
    out = jax.block_until_ready(out)

    ref = reference_block(x, params, cos, sin, num_heads=num_heads)
    ref = jax.block_until_ready(ref)

    assert out.shape == (B, S, H) and out.dtype == jnp.float32
    err = float(jnp.max(jnp.abs(out - ref)))
    # bf16 MXU operands (f32 accumulation) vs pure-f32 reference -> loose tol.
    if not jnp.allclose(out, ref, atol=3e-2, rtol=3e-2):
        raise AssertionError(f"mismatch: max abs err {err}")
    print("KERNEL_OK")
</pallas_src>

<mosaic_0001>
module attributes {stable_mosaic.version = 11 : i64} {
  func.func @block_kernel(%arg0: i32, %arg1: i32, %arg2: memref<1x16x32xf32, #tpu.memory_space<vmem>>, %arg3: memref<1x32xf32, #tpu.memory_space<vmem>>, %arg4: memref<32x64xbf16, #tpu.memory_space<vmem>>, %arg5: memref<32x96xbf16, #tpu.memory_space<vmem>>, %arg6: memref<32x32xbf16, #tpu.memory_space<vmem>>, %arg7: memref<8x32xf32, #tpu.memory_space<vmem>>, %arg8: memref<8x32xf32, #tpu.memory_space<vmem>>, %arg9: memref<16x32xf32, #tpu.memory_space<vmem>>, %arg10: memref<16x32xf32, #tpu.memory_space<vmem>>, %arg11: memref<1x32xf32, #tpu.memory_space<vmem>>, %arg12: memref<32x64xbf16, #tpu.memory_space<vmem>>, %arg13: memref<32x32xbf16, #tpu.memory_space<vmem>>, %arg14: memref<1x8x32xf32, #tpu.memory_space<vmem>>, %arg15: memref<8x32xbf16, #tpu.memory_space<vmem>>) attributes {dimension_semantics = [#tpu.dimension_semantics<parallel>, #tpu.dimension_semantics<parallel>], iteration_bounds = array<i64: 2, 2>, scalar_prefetch = 0 : i64, scratch_operands = 1 : i64, tpu.core_type = #tpu.core_type<tc>, window_params = [{transform_indices = @transform_0, window_bounds = array<i64: 1, 16, 32>}, {pipeline_mode = #tpu.pipeline_mode<synchronous>, transform_indices = @transform_1, window_bounds = array<i64: 1, 32>}, {pipeline_mode = #tpu.pipeline_mode<synchronous>, transform_indices = @transform_2, window_bounds = array<i64: 32, 64>}, {pipeline_mode = #tpu.pipeline_mode<synchronous>, transform_indices = @transform_3, window_bounds = array<i64: 32, 96>}, {pipeline_mode = #tpu.pipeline_mode<synchronous>, transform_indices = @transform_4, window_bounds = array<i64: 32, 32>}, {transform_indices = @transform_5, window_bounds = array<i64: 8, 32>}, {transform_indices = @transform_6, window_bounds = array<i64: 8, 32>}, {pipeline_mode = #tpu.pipeline_mode<synchronous>, transform_indices = @transform_7, window_bounds = array<i64: 16, 32>}, {pipeline_mode = #tpu.pipeline_mode<synchronous>, transform_indices = @transform_8, window_bounds = array<i64: 16, 32>}, {pipeline_mode = #tpu.pipeline_mode<synchronous>, transform_indices = @transform_9, window_bounds = array<i64: 1, 32>}, {pipeline_mode = #tpu.pipeline_mode<synchronous>, transform_indices = @transform_10, window_bounds = array<i64: 32, 64>}, {pipeline_mode = #tpu.pipeline_mode<synchronous>, transform_indices = @transform_11, window_bounds = array<i64: 32, 32>}, {transform_indices = @transform_12, window_bounds = array<i64: 1, 8, 32>}]} {
    %c8_i32 = arith.constant 8 : i32
    %0 = arith.muli %arg1, %c8_i32 : i32
    %1 = tpu.assume_multiple %0, 8 : i32
    %c0 = arith.constant 0 : index
    %c0_0 = arith.constant 0 : index
    %c0_1 = arith.constant 0 : index
    %2 = vector.load %arg2[%c0, %c0_0, %c0_1] : memref<1x16x32xf32, #tpu.memory_space<vmem>>, vector<1x16x32xf32>
    %3 = vector.shape_cast %2 : vector<1x16x32xf32> to vector<16x32xf32>
    %4 = arith.mulf %3, %3 : vector<16x32xf32>
    %cst = arith.constant dense<0.000000e+00> : vector<16xf32>
    %5 = vector.multi_reduction <add>, %4, %cst [1] : vector<16x32xf32> to vector<16xf32>
    %6 = vector.shape_cast %5 : vector<16xf32> to vector<16x1xf32>
    %cst_2 = arith.constant 3.200000e+01 : f32
    %7 = vector.broadcast %cst_2 : f32 to vector<16x1xf32>
    %8 = arith.divf %6, %7 : vector<16x1xf32>
    %cst_3 = arith.constant 9.99999974E-6 : f32
    %9 = vector.broadcast %cst_3 : f32 to vector<16x1xf32>
    %10 = arith.addf %8, %9 : vector<16x1xf32>
    %11 = math.rsqrt %10 : vector<16x1xf32>
    %12 = vector.broadcast %11 : vector<16x1xf32> to vector<16x32xf32>
    %13 = arith.mulf %3, %12 : vector<16x32xf32>
    %c0_4 = arith.constant 0 : index
    %c0_5 = arith.constant 0 : index
    %14 = vector.load %arg3[%c0_4, %c0_5] : memref<1x32xf32, #tpu.memory_space<vmem>>, vector<1x32xf32>
    %15 = vector.shape_cast %14 : vector<1x32xf32> to vector<32xf32>
    %16 = vector.shape_cast %15 : vector<32xf32> to vector<1x32xf32>
    %17 = vector.broadcast %16 : vector<1x32xf32> to vector<16x32xf32>
    %18 = arith.mulf %13, %17 : vector<16x32xf32>
    %c0_6 = arith.constant 0 : index
    %19 = arith.index_cast %1 : i32 to index
    %c0_7 = arith.constant 0 : index
    %20 = vector.load %arg2[%c0_6, %19, %c0_7] : memref<1x16x32xf32, #tpu.memory_space<vmem>>, vector<1x8x32xf32>
    %21 = vector.shape_cast %20 : vector<1x8x32xf32> to vector<8x32xf32>
    %22 = arith.mulf %21, %21 : vector<8x32xf32>
    %cst_8 = arith.constant dense<0.000000e+00> : vector<8xf32>
    %23 = vector.multi_reduction <add>, %22, %cst_8 [1] : vector<8x32xf32> to vector<8xf32>
    %24 = vector.shape_cast %23 : vector<8xf32> to vector<8x1xf32>
    %cst_9 = arith.constant 3.200000e+01 : f32
    %25 = vector.broadcast %cst_9 : f32 to vector<8x1xf32>
    %26 = arith.divf %24, %25 : vector<8x1xf32>
    %cst_10 = arith.constant 9.99999974E-6 : f32
    %27 = vector.broadcast %cst_10 : f32 to vector<8x1xf32>
    %28 = arith.addf %26, %27 : vector<8x1xf32>
    %29 = math.rsqrt %28 : vector<8x1xf32>
    %30 = vector.broadcast %29 : vector<8x1xf32> to vector<8x32xf32>
    %31 = arith.mulf %21, %30 : vector<8x32xf32>
    %c0_11 = arith.constant 0 : index
    %c0_12 = arith.constant 0 : index
    %32 = vector.load %arg3[%c0_11, %c0_12] : memref<1x32xf32, #tpu.memory_space<vmem>>, vector<1x32xf32>
    %33 = vector.shape_cast %32 : vector<1x32xf32> to vector<32xf32>
    %34 = vector.shape_cast %33 : vector<32xf32> to vector<1x32xf32>
    %35 = vector.broadcast %34 : vector<1x32xf32> to vector<8x32xf32>
    %36 = arith.mulf %31, %35 : vector<8x32xf32>
    %37 = arith.truncf %18 : vector<16x32xf32> to vector<16x32xbf16>
    %c0_13 = arith.constant 0 : index
    %c0_14 = arith.constant 0 : index
    %38 = vector.load %arg5[%c0_13, %c0_14] : memref<32x96xbf16, #tpu.memory_space<vmem>>, vector<32x96xbf16>
    %cst_15 = arith.constant dense<0.000000e+00> : vector<16x96xf32>
    %39 = tpu.matmul %37, %38, %cst_15 {dimension_numbers = #tpu.dot_dimension_numbers<[1], [0], [0], [1], [0, 0, 1, 1], [], []>} : vector<16x32xbf16>, vector<32x96xbf16>, vector<16x96xf32> -> vector<16x96xf32>
    %40 = arith.truncf %36 : vector<8x32xf32> to vector<8x32xbf16>
    %c0_16 = arith.constant 0 : index
    %c0_17 = arith.constant 0 : index
    %41 = vector.load %arg4[%c0_16, %c0_17] : memref<32x64xbf16, #tpu.memory_space<vmem>>, vector<32x64xbf16>
    %cst_18 = arith.constant dense<0.000000e+00> : vector<8x64xf32>
    %42 = tpu.matmul %40, %41, %cst_18 {dimension_numbers = #tpu.dot_dimension_numbers<[1], [0], [0], [1], [0, 0, 1, 1], [], []>} : vector<8x32xbf16>, vector<32x64xbf16>, vector<8x64xf32> -> vector<8x64xf32>
    %43 = vector.extract_strided_slice %42 {offsets = [0, 0], sizes = [8, 32], strides = [1, 1]} : vector<8x64xf32> to vector<8x32xf32>
    %c0_19 = arith.constant 0 : index
    %c0_20 = arith.constant 0 : index
    %44 = vector.load %arg7[%c0_19, %c0_20] : memref<8x32xf32, #tpu.memory_space<vmem>>, vector<8x32xf32>
    %45 = arith.mulf %43, %44 : vector<8x32xf32>
    %46 = vector.extract_strided_slice %42 {offsets = [0, 32], sizes = [8, 32], strides = [1, 1]} : vector<8x64xf32> to vector<8x32xf32>
    %c0_21 = arith.constant 0 : index
    %c0_22 = arith.constant 0 : index
    %47 = vector.load %arg8[%c0_21, %c0_22] : memref<8x32xf32, #tpu.memory_space<vmem>>, vector<8x32xf32>
    %48 = arith.mulf %46, %47 : vector<8x32xf32>
    %49 = arith.addf %45, %48 : vector<8x32xf32>
    %50 = vector.extract_strided_slice %39 {offsets = [0, 0], sizes = [16, 32], strides = [1, 1]} : vector<16x96xf32> to vector<16x32xf32>
    %c0_23 = arith.constant 0 : index
    %c0_24 = arith.constant 0 : index
    %51 = vector.load %arg9[%c0_23, %c0_24] : memref<16x32xf32, #tpu.memory_space<vmem>>, vector<16x32xf32>
    %52 = arith.mulf %50, %51 : vector<16x32xf32>
    %53 = vector.extract_strided_slice %39 {offsets = [0, 32], sizes = [16, 32], strides = [1, 1]} : vector<16x96xf32> to vector<16x32xf32>
    %c0_25 = arith.constant 0 : index
    %c0_26 = arith.constant 0 : index
    %54 = vector.load %arg10[%c0_25, %c0_26] : memref<16x32xf32, #tpu.memory_space<vmem>>, vector<16x32xf32>
    %55 = arith.mulf %53, %54 : vector<16x32xf32>
    %56 = arith.addf %52, %55 : vector<16x32xf32>
    %57 = vector.extract_strided_slice %39 {offsets = [0, 64], sizes = [16, 32], strides = [1, 1]} : vector<16x96xf32> to vector<16x32xf32>
    %58 = tpu.iota {dimensions = array<i32: 0>} : vector<8x16xi32>
    %59 = vector.broadcast %1 : i32 to vector<8x16xi32>
    %60 = arith.addi %59, %58 : vector<8x16xi32>
    %61 = tpu.iota {dimensions = array<i32: 1>} : vector<8x16xi32>
    %62 = arith.cmpi sgt, %61, %60 : vector<8x16xi32>
    %63 = vector.extract_strided_slice %49 {offsets = [0, 0], sizes = [8, 8], strides = [1, 1]} : vector<8x32xf32> to vector<8x8xf32>
    %64 = arith.truncf %63 : vector<8x8xf32> to vector<8x8xbf16>
    %65 = vector.extract_strided_slice %56 {offsets = [0, 0], sizes = [16, 8], strides = [1, 1]} : vector<16x32xf32> to vector<16x8xf32>
    %66 = arith.truncf %65 : vector<16x8xf32> to vector<16x8xbf16>
    %67 = vector.extract_strided_slice %57 {offsets = [0, 0], sizes = [16, 8], strides = [1, 1]} : vector<16x32xf32> to vector<16x8xf32>
    %68 = arith.truncf %67 : vector<16x8xf32> to vector<16x8xbf16>
    %cst_27 = arith.constant dense<0.000000e+00> : vector<8x16xf32>
    %69 = tpu.matmul %64, %66, %cst_27 {dimension_numbers = #tpu.dot_dimension_numbers<[1], [1], [0], [0], [0, 0, 1, 0], [], []>} : vector<8x8xbf16>, vector<16x8xbf16>, vector<8x16xf32> -> vector<8x16xf32>
    %cst_28 = arith.constant -1.000000e+30 : f32
    %70 = vector.broadcast %cst_28 : f32 to vector<8x16xf32>
    %71 = arith.select %62, %70, %69 : vector<8x16xi1>, vector<8x16xf32>
    %cst_29 = arith.constant dense<0xFF800000> : vector<8xf32>
    %72 = vector.multi_reduction <maximumf>, %71, %cst_29 [1] : vector<8x16xf32> to vector<8xf32>
    %73 = vector.shape_cast %72 : vector<8xf32> to vector<8x1xf32>
    %74 = vector.broadcast %73 : vector<8x1xf32> to vector<8x16xf32>
    %75 = arith.subf %71, %74 : vector<8x16xf32>
    %76 = math.exp %75 : vector<8x16xf32>
    %cst_30 = arith.constant dense<0.000000e+00> : vector<8xf32>
    %77 = vector.multi_reduction <add>, %76, %cst_30 [1] : vector<8x16xf32> to vector<8xf32>
    %78 = vector.shape_cast %77 : vector<8xf32> to vector<8x1xf32>
    %79 = tpu.reciprocal %78 {approx = true} : vector<8x1xf32> -> vector<8x1xf32>
    %80 = vector.broadcast %79 : vector<8x1xf32> to vector<8x16xf32>
    %81 = arith.mulf %76, %80 : vector<8x16xf32>
    %82 = arith.truncf %81 : vector<8x16xf32> to vector<8x16xbf16>
    %cst_31 = arith.constant dense<0.000000e+00> : vector<8x8xf32>
    %83 = tpu.matmul %82, %68, %cst_31 {dimension_numbers = #tpu.dot_dimension_numbers<[1], [0], [0], [1], [0, 0, 1, 1], [], []>} : vector<8x16xbf16>, vector<16x8xbf16>, vector<8x8xf32> -> vector<8x8xf32>
    %84 = arith.truncf %83 : vector<8x8xf32> to vector<8x8xbf16>
    %c0_32 = arith.constant 0 : index
    %c0_33 = arith.constant 0 : index
    %85 = vector.load %arg15[%c0_32, %c0_33] : memref<8x32xbf16, #tpu.memory_space<vmem>>, vector<8x8xbf16>
    tpu.vector_store %arg15[%c0_32, %c0_33], %84 {strides = array<i32>} : memref<8x32xbf16, #tpu.memory_space<vmem>>, vector<8x8xbf16>,
    %86 = vector.extract_strided_slice %49 {offsets = [0, 8], sizes = [8, 8], strides = [1, 1]} : vector<8x32xf32> to vector<8x8xf32>
    %87 = arith.truncf %86 : vector<8x8xf32> to vector<8x8xbf16>
    %88 = vector.extract_strided_slice %56 {offsets = [0, 8], sizes = [16, 8], strides = [1, 1]} : vector<16x32xf32> to vector<16x8xf32>
    %89 = arith.truncf %88 : vector<16x8xf32> to vector<16x8xbf16>
    %90 = vector.extract_strided_slice %57 {offsets = [0, 8], sizes = [16, 8], strides = [1, 1]} : vector<16x32xf32> to vector<16x8xf32>
    %91 = arith.truncf %90 : vector<16x8xf32> to vector<16x8xbf16>
    %cst_34 = arith.constant dense<0.000000e+00> : vector<8x16xf32>
    %92 = tpu.matmul %87, %89, %cst_34 {dimension_numbers = #tpu.dot_dimension_numbers<[1], [1], [0], [0], [0, 0, 1, 0], [], []>} : vector<8x8xbf16>, vector<16x8xbf16>, vector<8x16xf32> -> vector<8x16xf32>
    %cst_35 = arith.constant -1.000000e+30 : f32
    %93 = vector.broadcast %cst_35 : f32 to vector<8x16xf32>
    %94 = arith.select %62, %93, %92 : vector<8x16xi1>, vector<8x16xf32>
    %cst_36 = arith.constant dense<0xFF800000> : vector<8xf32>
    %95 = vector.multi_reduction <maximumf>, %94, %cst_36 [1] : vector<8x16xf32> to vector<8xf32>
    %96 = vector.shape_cast %95 : vector<8xf32> to vector<8x1xf32>
    %97 = vector.broadcast %96 : vector<8x1xf32> to vector<8x16xf32>
    %98 = arith.subf %94, %97 : vector<8x16xf32>
    %99 = math.exp %98 : vector<8x16xf32>
    %cst_37 = arith.constant dense<0.000000e+00> : vector<8xf32>
    %100 = vector.multi_reduction <add>, %99, %cst_37 [1] : vector<8x16xf32> to vector<8xf32>
    %101 = vector.shape_cast %100 : vector<8xf32> to vector<8x1xf32>
    %102 = tpu.reciprocal %101 {approx = true} : vector<8x1xf32> -> vector<8x1xf32>
    %103 = vector.broadcast %102 : vector<8x1xf32> to vector<8x16xf32>
    %104 = arith.mulf %99, %103 : vector<8x16xf32>
    %105 = arith.truncf %104 : vector<8x16xf32> to vector<8x16xbf16>
    %cst_38 = arith.constant dense<0.000000e+00> : vector<8x8xf32>
    %106 = tpu.matmul %105, %91, %cst_38 {dimension_numbers = #tpu.dot_dimension_numbers<[1], [0], [0], [1], [0, 0, 1, 1], [], []>} : vector<8x16xbf16>, vector<16x8xbf16>, vector<8x8xf32> -> vector<8x8xf32>
    %107 = arith.truncf %106 : vector<8x8xf32> to vector<8x8xbf16>
    %c0_39 = arith.constant 0 : index
    %c8 = arith.constant 8 : index
    %108 = vector.load %arg15[%c0_39, %c8] : memref<8x32xbf16, #tpu.memory_space<vmem>>, vector<8x8xbf16>
    tpu.vector_store %arg15[%c0_39, %c8], %107 {strides = array<i32>} : memref<8x32xbf16, #tpu.memory_space<vmem>>, vector<8x8xbf16>,
    %109 = vector.extract_strided_slice %49 {offsets = [0, 16], sizes = [8, 8], strides = [1, 1]} : vector<8x32xf32> to vector<8x8xf32>
    %110 = arith.truncf %109 : vector<8x8xf32> to vector<8x8xbf16>
    %111 = vector.extract_strided_slice %56 {offsets = [0, 16], sizes = [16, 8], strides = [1, 1]} : vector<16x32xf32> to vector<16x8xf32>
    %112 = arith.truncf %111 : vector<16x8xf32> to vector<16x8xbf16>
    %113 = vector.extract_strided_slice %57 {offsets = [0, 16], sizes = [16, 8], strides = [1, 1]} : vector<16x32xf32> to vector<16x8xf32>
    %114 = arith.truncf %113 : vector<16x8xf32> to vector<16x8xbf16>
    %cst_40 = arith.constant dense<0.000000e+00> : vector<8x16xf32>
    %115 = tpu.matmul %110, %112, %cst_40 {dimension_numbers = #tpu.dot_dimension_numbers<[1], [1], [0], [0], [0, 0, 1, 0], [], []>} : vector<8x8xbf16>, vector<16x8xbf16>, vector<8x16xf32> -> vector<8x16xf32>
    %cst_41 = arith.constant -1.000000e+30 : f32
    %116 = vector.broadcast %cst_41 : f32 to vector<8x16xf32>
    %117 = arith.select %62, %116, %115 : vector<8x16xi1>, vector<8x16xf32>
    %cst_42 = arith.constant dense<0xFF800000> : vector<8xf32>
    %118 = vector.multi_reduction <maximumf>, %117, %cst_42 [1] : vector<8x16xf32> to vector<8xf32>
    %119 = vector.shape_cast %118 : vector<8xf32> to vector<8x1xf32>
    %120 = vector.broadcast %119 : vector<8x1xf32> to vector<8x16xf32>
    %121 = arith.subf %117, %120 : vector<8x16xf32>
    %122 = math.exp %121 : vector<8x16xf32>
    %cst_43 = arith.constant dense<0.000000e+00> : vector<8xf32>
    %123 = vector.multi_reduction <add>, %122, %cst_43 [1] : vector<8x16xf32> to vector<8xf32>
    %124 = vector.shape_cast %123 : vector<8xf32> to vector<8x1xf32>
    %125 = tpu.reciprocal %124 {approx = true} : vector<8x1xf32> -> vector<8x1xf32>
    %126 = vector.broadcast %125 : vector<8x1xf32> to vector<8x16xf32>
    %127 = arith.mulf %122, %126 : vector<8x16xf32>
    %128 = arith.truncf %127 : vector<8x16xf32> to vector<8x16xbf16>
    %cst_44 = arith.constant dense<0.000000e+00> : vector<8x8xf32>
    %129 = tpu.matmul %128, %114, %cst_44 {dimension_numbers = #tpu.dot_dimension_numbers<[1], [0], [0], [1], [0, 0, 1, 1], [], []>} : vector<8x16xbf16>, vector<16x8xbf16>, vector<8x8xf32> -> vector<8x8xf32>
    %130 = arith.truncf %129 : vector<8x8xf32> to vector<8x8xbf16>
    %c0_45 = arith.constant 0 : index
    %c16 = arith.constant 16 : index
    %131 = vector.load %arg15[%c0_45, %c16] : memref<8x32xbf16, #tpu.memory_space<vmem>>, vector<8x8xbf16>
    tpu.vector_store %arg15[%c0_45, %c16], %130 {strides = array<i32>} : memref<8x32xbf16, #tpu.memory_space<vmem>>, vector<8x8xbf16>,
    %132 = vector.extract_strided_slice %49 {offsets = [0, 24], sizes = [8, 8], strides = [1, 1]} : vector<8x32xf32> to vector<8x8xf32>
    %133 = arith.truncf %132 : vector<8x8xf32> to vector<8x8xbf16>
    %134 = vector.extract_strided_slice %56 {offsets = [0, 24], sizes = [16, 8], strides = [1, 1]} : vector<16x32xf32> to vector<16x8xf32>
    %135 = arith.truncf %134 : vector<16x8xf32> to vector<16x8xbf16>
    %136 = vector.extract_strided_slice %57 {offsets = [0, 24], sizes = [16, 8], strides = [1, 1]} : vector<16x32xf32> to vector<16x8xf32>
    %137 = arith.truncf %136 : vector<16x8xf32> to vector<16x8xbf16>
    %cst_46 = arith.constant dense<0.000000e+00> : vector<8x16xf32>
    %138 = tpu.matmul %133, %135, %cst_46 {dimension_numbers = #tpu.dot_dimension_numbers<[1], [1], [0], [0], [0, 0, 1, 0], [], []>} : vector<8x8xbf16>, vector<16x8xbf16>, vector<8x16xf32> -> vector<8x16xf32>
    %cst_47 = arith.constant -1.000000e+30 : f32
    %139 = vector.broadcast %cst_47 : f32 to vector<8x16xf32>
    %140 = arith.select %62, %139, %138 : vector<8x16xi1>, vector<8x16xf32>
    %cst_48 = arith.constant dense<0xFF800000> : vector<8xf32>
    %141 = vector.multi_reduction <maximumf>, %140, %cst_48 [1] : vector<8x16xf32> to vector<8xf32>
    %142 = vector.shape_cast %141 : vector<8xf32> to vector<8x1xf32>
    %143 = vector.broadcast %142 : vector<8x1xf32> to vector<8x16xf32>
    %144 = arith.subf %140, %143 : vector<8x16xf32>
    %145 = math.exp %144 : vector<8x16xf32>
    %cst_49 = arith.constant dense<0.000000e+00> : vector<8xf32>
    %146 = vector.multi_reduction <add>, %145, %cst_49 [1] : vector<8x16xf32> to vector<8xf32>
    %147 = vector.shape_cast %146 : vector<8xf32> to vector<8x1xf32>
    %148 = tpu.reciprocal %147 {approx = true} : vector<8x1xf32> -> vector<8x1xf32>
    %149 = vector.broadcast %148 : vector<8x1xf32> to vector<8x16xf32>
    %150 = arith.mulf %145, %149 : vector<8x16xf32>
    %151 = arith.truncf %150 : vector<8x16xf32> to vector<8x16xbf16>
    %cst_50 = arith.constant dense<0.000000e+00> : vector<8x8xf32>
    %152 = tpu.matmul %151, %137, %cst_50 {dimension_numbers = #tpu.dot_dimension_numbers<[1], [0], [0], [1], [0, 0, 1, 1], [], []>} : vector<8x16xbf16>, vector<16x8xbf16>, vector<8x8xf32> -> vector<8x8xf32>
    %153 = arith.truncf %152 : vector<8x8xf32> to vector<8x8xbf16>
    %c0_51 = arith.constant 0 : index
    %c24 = arith.constant 24 : index
    %154 = vector.load %arg15[%c0_51, %c24] : memref<8x32xbf16, #tpu.memory_space<vmem>>, vector<8x8xbf16>
    tpu.vector_store %arg15[%c0_51, %c24], %153 {strides = array<i32>} : memref<8x32xbf16, #tpu.memory_space<vmem>>, vector<8x8xbf16>,
    %c0_52 = arith.constant 0 : index
    %c0_53 = arith.constant 0 : index
    %155 = vector.load %arg15[%c0_52, %c0_53] : memref<8x32xbf16, #tpu.memory_space<vmem>>, vector<8x32xbf16>
    %c0_54 = arith.constant 0 : index
    %c0_55 = arith.constant 0 : index
    %156 = vector.load %arg6[%c0_54, %c0_55] : memref<32x32xbf16, #tpu.memory_space<vmem>>, vector<32x32xbf16>
    %cst_56 = arith.constant dense<0.000000e+00> : vector<8x32xf32>
    %157 = tpu.matmul %155, %156, %cst_56 {dimension_numbers = #tpu.dot_dimension_numbers<[1], [0], [0], [1], [0, 0, 1, 1], [], []>} : vector<8x32xbf16>, vector<32x32xbf16>, vector<8x32xf32> -> vector<8x32xf32>
    %158 = arith.addf %21, %157 : vector<8x32xf32>
    %159 = arith.mulf %158, %158 : vector<8x32xf32>
    %cst_57 = arith.constant dense<0.000000e+00> : vector<8xf32>
    %160 = vector.multi_reduction <add>, %159, %cst_57 [1] : vector<8x32xf32> to vector<8xf32>
    %161 = vector.shape_cast %160 : vector<8xf32> to vector<8x1xf32>
    %cst_58 = arith.constant 3.200000e+01 : f32
    %162 = vector.broadcast %cst_58 : f32 to vector<8x1xf32>
    %163 = arith.divf %161, %162 : vector<8x1xf32>
    %cst_59 = arith.constant 9.99999974E-6 : f32
    %164 = vector.broadcast %cst_59 : f32 to vector<8x1xf32>
    %165 = arith.addf %163, %164 : vector<8x1xf32>
    %166 = math.rsqrt %165 : vector<8x1xf32>
    %167 = vector.broadcast %166 : vector<8x1xf32> to vector<8x32xf32>
    %168 = arith.mulf %158, %167 : vector<8x32xf32>
    %c0_60 = arith.constant 0 : index
    %c0_61 = arith.constant 0 : index
    %169 = vector.load %arg11[%c0_60, %c0_61] : memref<1x32xf32, #tpu.memory_space<vmem>>, vector<1x32xf32>
    %170 = vector.shape_cast %169 : vector<1x32xf32> to vector<32xf32>
    %171 = vector.shape_cast %170 : vector<32xf32> to vector<1x32xf32>
    %172 = vector.broadcast %171 : vector<1x32xf32> to vector<8x32xf32>
    %173 = arith.mulf %168, %172 : vector<8x32xf32>
    %174 = arith.truncf %173 : vector<8x32xf32> to vector<8x32xbf16>
    %c0_62 = arith.constant 0 : index
    %c0_63 = arith.constant 0 : index
    %175 = vector.load %arg12[%c0_62, %c0_63] : memref<32x64xbf16, #tpu.memory_space<vmem>>, vector<32x64xbf16>
    %cst_64 = arith.constant dense<0.000000e+00> : vector<8x64xf32>
    %176 = tpu.matmul %174, %175, %cst_64 {dimension_numbers = #tpu.dot_dimension_numbers<[1], [0], [0], [1], [0, 0, 1, 1], [], []>} : vector<8x32xbf16>, vector<32x64xbf16>, vector<8x64xf32> -> vector<8x64xf32>
    %177 = vector.extract_strided_slice %176 {offsets = [0, 0], sizes = [8, 32], strides = [1, 1]} : vector<8x64xf32> to vector<8x32xf32>
    %178 = arith.negf %177 : vector<8x32xf32>
    %179 = math.exp %178 : vector<8x32xf32>
    %cst_65 = arith.constant 1.000000e+00 : f32
    %180 = vector.broadcast %cst_65 : f32 to vector<8x32xf32>
    %181 = arith.addf %180, %179 : vector<8x32xf32>
    %182 = arith.divf %180, %181 : vector<8x32xf32>
    %183 = arith.mulf %177, %182 : vector<8x32xf32>
    %184 = vector.extract_strided_slice %176 {offsets = [0, 32], sizes = [8, 32], strides = [1, 1]} : vector<8x64xf32> to vector<8x32xf32>
    %185 = arith.mulf %183, %184 : vector<8x32xf32>
    %186 = arith.truncf %185 : vector<8x32xf32> to vector<8x32xbf16>
    %c0_66 = arith.constant 0 : index
    %c0_67 = arith.constant 0 : index
    %187 = vector.load %arg13[%c0_66, %c0_67] : memref<32x32xbf16, #tpu.memory_space<vmem>>, vector<32x32xbf16>
    %cst_68 = arith.constant dense<0.000000e+00> : vector<8x32xf32>
    %188 = tpu.matmul %186, %187, %cst_68 {dimension_numbers = #tpu.dot_dimension_numbers<[1], [0], [0], [1], [0, 0, 1, 1], [], []>} : vector<8x32xbf16>, vector<32x32xbf16>, vector<8x32xf32> -> vector<8x32xf32>
    %189 = arith.addf %188, %158 : vector<8x32xf32>
    %c0_69 = arith.constant 0 : index
    %c0_70 = arith.constant 0 : index
    %c0_71 = arith.constant 0 : index
    %190 = vector.load %arg14[%c0_69, %c0_70, %c0_71] : memref<1x8x32xf32, #tpu.memory_space<vmem>>, vector<1x8x32xf32>
    %191 = vector.shape_cast %190 : vector<1x8x32xf32> to vector<8x32xf32>
    %192 = vector.shape_cast %189 : vector<8x32xf32> to vector<1x8x32xf32>
    tpu.vector_store %arg14[%c0_69, %c0_70, %c0_71], %192 {strides = array<i32>} : memref<1x8x32xf32, #tpu.memory_space<vmem>>, vector<1x8x32xf32>,
    return
  }
  func.func @transform_0(%arg0: i32, %arg1: i32) -> (i32, i32, i32) {
    %c0_i32 = arith.constant 0 : i32
    %c0_i32_0 = arith.constant 0 : i32
    %c0_i32_1 = arith.constant 0 : i32
    return %arg0, %c0_i32, %c0_i32_0 : i32, i32, i32
  }
  func.func @transform_1(%arg0: i32, %arg1: i32) -> (i32, i32) {
    %c0_i32 = arith.constant 0 : i32
    %c0_i32_0 = arith.constant 0 : i32
    %c0_i32_1 = arith.constant 0 : i32
    return %c0_i32, %c0_i32_0 : i32, i32
  }
  func.func @transform_2(%arg0: i32, %arg1: i32) -> (i32, i32) {
    %c0_i32 = arith.constant 0 : i32
    %c0_i32_0 = arith.constant 0 : i32
    %c0_i32_1 = arith.constant 0 : i32
    return %c0_i32, %c0_i32_0 : i32, i32
  }
  func.func @transform_3(%arg0: i32, %arg1: i32) -> (i32, i32) {
    %c0_i32 = arith.constant 0 : i32
    %c0_i32_0 = arith.constant 0 : i32
    %c0_i32_1 = arith.constant 0 : i32
    return %c0_i32, %c0_i32_0 : i32, i32
  }
  func.func @transform_4(%arg0: i32, %arg1: i32) -> (i32, i32) {
    %c0_i32 = arith.constant 0 : i32
    %c0_i32_0 = arith.constant 0 : i32
    %c0_i32_1 = arith.constant 0 : i32
    return %c0_i32, %c0_i32_0 : i32, i32
  }
  func.func @transform_5(%arg0: i32, %arg1: i32) -> (i32, i32) {
    %c0_i32 = arith.constant 0 : i32
    %c0_i32_0 = arith.constant 0 : i32
    return %arg1, %c0_i32 : i32, i32
  }
  func.func @transform_6(%arg0: i32, %arg1: i32) -> (i32, i32) {
    %c0_i32 = arith.constant 0 : i32
    %c0_i32_0 = arith.constant 0 : i32
    return %arg1, %c0_i32 : i32, i32
  }
  func.func @transform_7(%arg0: i32, %arg1: i32) -> (i32, i32) {
    %c0_i32 = arith.constant 0 : i32
    %c0_i32_0 = arith.constant 0 : i32
    %c0_i32_1 = arith.constant 0 : i32
    return %c0_i32, %c0_i32_0 : i32, i32
  }
  func.func @transform_8(%arg0: i32, %arg1: i32) -> (i32, i32) {
    %c0_i32 = arith.constant 0 : i32
    %c0_i32_0 = arith.constant 0 : i32
    %c0_i32_1 = arith.constant 0 : i32
    return %c0_i32, %c0_i32_0 : i32, i32
  }
  func.func @transform_9(%arg0: i32, %arg1: i32) -> (i32, i32) {
    %c0_i32 = arith.constant 0 : i32
    %c0_i32_0 = arith.constant 0 : i32
    %c0_i32_1 = arith.constant 0 : i32
    return %c0_i32, %c0_i32_0 : i32, i32
  }
  func.func @transform_10(%arg0: i32, %arg1: i32) -> (i32, i32) {
    %c0_i32 = arith.constant 0 : i32
    %c0_i32_0 = arith.constant 0 : i32
    %c0_i32_1 = arith.constant 0 : i32
    return %c0_i32, %c0_i32_0 : i32, i32
  }
  func.func @transform_11(%arg0: i32, %arg1: i32) -> (i32, i32) {
    %c0_i32 = arith.constant 0 : i32
    %c0_i32_0 = arith.constant 0 : i32
    %c0_i32_1 = arith.constant 0 : i32
    return %c0_i32, %c0_i32_0 : i32, i32
  }
  func.func @transform_12(%arg0: i32, %arg1: i32) -> (i32, i32, i32) {
    %c0_i32 = arith.constant 0 : i32
    %c0_i32_0 = arith.constant 0 : i32
    return %arg0, %arg1, %c0_i32 : i32, i32, i32
  }
}

</mosaic_0001>

<llo_original>
// kernel: tpu_custom_call.1
$region0: #{tpu_custom_call.1}
  #allocation0 [shape = 'u32[]', space=smem, size = 0x4, offset = 0x4, fixed_abs, tag = 'smem constant byte address 0x4 - core index']
  #allocation1 [shape = 'u32[144,128]{1,0:T(1,128)}', space=vmem, size = 0x12000, scoped, tag = 'internal scratch']
  #allocation2 [shape = 'bf16[8,32]{1,0:T(8,128)(2,1)}', space=vmem, size = 0x800, scoped, tag = 'scratch operand']
  %s0 = inlined_call_operand.hbm [shape: f32[2,16,32], index: 0, kind: input, shape index: {}]
  %s1 = inlined_call_operand.vmem [shape: f32[1,32], index: 1, kind: input, shape index: {}]
  %s2 = inlined_call_operand.hbm [shape: bf16[32,64], index: 2, kind: input, shape index: {}]
  %s3 = inlined_call_operand.hbm [shape: bf16[32,96], index: 3, kind: input, shape index: {}]
  %s4 = inlined_call_operand.hbm [shape: bf16[32,32], index: 4, kind: input, shape index: {}]
  %s5 = inlined_call_operand.vmem [shape: f32[16,32], index: 5, kind: input, shape index: {}]
  %s6 = inlined_call_operand.hbm [shape: f32[16,32], index: 6, kind: input, shape index: {}]
  %s7 = inlined_call_operand.hbm [shape: f32[16,32], index: 7, kind: input, shape index: {}]
  %s8 = inlined_call_operand.hbm [shape: f32[16,32], index: 8, kind: input, shape index: {}]
  %s9 = inlined_call_operand.vmem [shape: f32[1,32], index: 9, kind: input, shape index: {}]
  %s10 = inlined_call_operand.vmem [shape: bf16[32,64], index: 10, kind: input, shape index: {}]
  %s11 = inlined_call_operand.hbm [shape: bf16[32,32], index: 11, kind: input, shape index: {}]
  %s12 = inlined_call_operand.hbm [shape: f32[2,16,32], index: 12, kind: output, shape index: {}]
  %s13 = sld [smem:[#allocation0]]
  $region113: #{tpu_custom_call.1} parent=0
    _
  %s15 = ssub.s32 1, %s13
  %s16 = scalar_select 0, %s15, %s13
  $region1: #{tpu_custom_call.1} parent=0
    #allocation3 [shape = 'u8[16384]{0}', space=vmem, size = 0x4000, scoped, tag = 'input window, operand 0']
    #allocation4 [shape = 's32[2]{0}', space=sflag, size = 0x8, scoped, tag = 'scoped memory for tpu_custom_call.1']
    #allocation5 [shape = 's32[2]{0}', space=sflag, size = 0x8, scoped, tag = 'scoped memory for tpu_custom_call.1']
    #allocation6 [shape = 'u8[8192]{0}', space=vmem, size = 0x2000, scoped, tag = 'input window, operand 2, single buffered']
    #allocation7 [shape = 's32[1]{0}', space=sflag, size = 0x4, scoped, tag = 'scoped memory for tpu_custom_call.1']
    #allocation8 [shape = 'u8[8192]{0}', space=vmem, size = 0x2000, scoped, tag = 'input window, operand 3, single buffered']
    #allocation9 [shape = 'u8[8192]{0}', space=vmem, size = 0x2000, scoped, tag = 'input window, operand 4, single buffered']
    #allocation10 [shape = 's32[1]{0}', space=sflag, size = 0x4, scoped, tag = 'scoped memory for tpu_custom_call.1']
    #allocation11 [shape = 'u8[8192]{0}', space=vmem, size = 0x2000, scoped, tag = 'input window, operand 6']
    #allocation12 [shape = 'u8[8192]{0}', space=vmem, size = 0x2000, scoped, tag = 'input window, operand 7, single buffered']
    #allocation13 [shape = 'u8[8192]{0}', space=vmem, size = 0x2000, scoped, tag = 'input window, operand 8, single buffered']
    #allocation14 [shape = 'u8[8192]{0}', space=vmem, size = 0x2000, scoped, tag = 'input window, operand 11, single buffered']
    #allocation15 [shape = 's32[1]{0}', space=sflag, size = 0x4, scoped, tag = 'scoped memory for tpu_custom_call.1']
    #allocation16 [shape = 'u8[8192]{0}', space=vmem, size = 0x2000, scoped, tag = 'output window, operand 0']
    %17 = vsyncpa [#allocation4], 0
    %s18 = scalar_lea.sflag [#allocation4], 1
    %19 = vsyncpa %s18, 0
    %20 = vsyncpa [#allocation7], 0
    %21 = vsyncpa [#allocation10], 0
    %22 = vsyncpa [#allocation15], 0
    %23 = vsyncpa [#allocation5], 0
    %s24 = scalar_lea.sflag [#allocation5], 1
    %25 = vsyncpa %s24, 0
    loop: start=0, step=1, limit=6
    $region2: #{tpu_custom_call.1} parent=1 // loop_pre_header
      _
    $region3: #{tpu_custom_call.1} parent=1 // loop_header
      %s27 = sphi 0, %s31
      %p28 = scmp.ge.s32.totalorder %s27, 6
      %s34 = sphi 0, %s46
      %s35 = sphi 0, %s42
      %s36 = sphi 0, %s34
      %s37 = sphi 0, %s35
      %s38 = sphi 0, %s36
      %s39 = sphi 0, %s37
      %s49 = sphi 0, %s51
      %s52 = sphi 0, %s49
      %s53 = sphi 0, %s52
      %s69 = sphi 0, %s53
      %s73 = sphi 0, %s73
      %s75 = sphi 0, %s73
      %s76 = sphi 0, %s75
      %s90 = sphi 0, %s76
      %s94 = sphi 0, %s94
      %s96 = sphi 0, %s94
      %s97 = sphi 0, %s96
      %s111 = sphi 0, %s97
      %s115 = sphi 0, %s115
      %s117 = sphi 0, %s115
      %s118 = sphi 0, %s117
      %s132 = sphi 0, %s118
      %s136 = sphi 0, %s136
      %s138 = sphi 0, %s136
      %s139 = sphi 0, %s138
      %s153 = sphi 0, %s139
      %s159 = sphi 0, %s161
      %s162 = sphi 0, %s159
      %s163 = sphi 0, %s162
      %s179 = sphi 0, %s163
      %s185 = sphi 0, %s187
      %s188 = sphi 0, %s185
      %s189 = sphi 0, %s188
      %s205 = sphi 0, %s189
      %s209 = sphi 0, %s209
      %s211 = sphi 0, %s209
      %s212 = sphi 0, %s211
      %s226 = sphi 0, %s212
      %s230 = sphi 0, %s230
      %s232 = sphi 0, %s230
      %s233 = sphi 0, %s232
      %s247 = sphi 0, %s233
      %s251 = sphi 0, %s251
      %s253 = sphi 0, %s251
      %s254 = sphi 0, %s253
      %s268 = sphi 0, %s254
      %s272 = sphi 0, %s272
      %s274 = sphi 0, %s272
      %s275 = sphi 0, %s274
      %s289 = sphi 0, %s275
      %s293 = sphi 0, %s293
      %s295 = sphi 0, %s293
      %s296 = sphi 0, %s295
      %s310 = sphi 0, %s296
      %s318 = sphi 0, %s320
      %s321 = sphi 0, %s318
      %s322 = sphi 0, %s321
      %s338 = sphi 0, %s322
    $region4: #{tpu_custom_call.1} parent=1 // loop_header_branch
      %30 = sbr.rel (%p28) target = $region8
    $region5: #{tpu_custom_call.1} parent=1 // loop_body
      %s32 = ssub.s32 %s27, 1
      %s33 = ssub.s32 %s27, 2
      %s40 = sadd.s32 1, %s35
      %p41 = scmp.ge.s32.totalorder %s40, 2
      %s42 = scalar_select %p41, 0, %s40
      %s43 = sadd.s32 1, %s34
      %s44 = scalar_select %p41, %s43, %s34
      %p45 = scmp.ge.s32.totalorder %s44, 2
      %s46 = scalar_select %p45, 0, %s44
      %s47 = ssub.s32 %s34, %s46
      %p48 = scmp.eq.s32.totalorder %s47, 0
      %s50 = sadd.s32 %s49, 1
      %s51 = scalar_select %p48, %s49, %s50
      %p54 = pneg %p48
      %p55 = scmp.eq.s32.totalorder %s27, 3
      %p56 = por %p54, %p55
      %p57 = scmp.ne.s32.totalorder %s49, %s52
      %p58 = scmp.eq.s32.totalorder %s27, 0
      %p59 = por %p57, %p58
      %p60 = scmp.ne.s32.totalorder %s49, %s52
      %p61 = scmp.eq.s32.totalorder %s32, 3
      %p62 = por %p60, %p61
      %p63 = scmp.ne.s32.totalorder %s52, %s53
      %p64 = scmp.eq.s32.totalorder %s32, 0
      %p65 = por %p63, %p64
      %p66 = scmp.ne.s32.totalorder %s52, %s53
      %p67 = scmp.eq.s32.totalorder %s33, 3
      %p68 = por %p66, %p67
      %p70 = scmp.ne.s32.totalorder %s53, %s69
      %p71 = scmp.eq.s32.totalorder %s33, 0
      %p72 = por %p70, %p71
      %s74 = sadd.s32 %s73, 1
      %p77 = scmp.eq.s32.totalorder %s27, 3
      %p78 = scmp.ne.s32.totalorder %s73, %s75
      %p79 = scmp.eq.s32.totalorder %s27, 0
      %p80 = por %p78, %p79
      %p81 = scmp.ne.s32.totalorder %s73, %s75
      %p82 = scmp.eq.s32.totalorder %s32, 3
      %p83 = por %p81, %p82
      %p84 = scmp.ne.s32.totalorder %s75, %s76
      %p85 = scmp.eq.s32.totalorder %s32, 0
      %p86 = por %p84, %p85
      %p87 = scmp.ne.s32.totalorder %s75, %s76
      %p88 = scmp.eq.s32.totalorder %s33, 3
      %p89 = por %p87, %p88
      %p91 = scmp.ne.s32.totalorder %s76, %s90
      %p92 = scmp.eq.s32.totalorder %s33, 0
      %p93 = por %p91, %p92
      %s95 = sadd.s32 %s94, 1
      %p98 = scmp.eq.s32.totalorder %s27, 3
      %p99 = scmp.ne.s32.totalorder %s94, %s96
      %p100 = scmp.eq.s32.totalorder %s27, 0
      %p101 = por %p99, %p100
      %p102 = scmp.ne.s32.totalorder %s94, %s96
      %p103 = scmp.eq.s32.totalorder %s32, 3
      %p104 = por %p102, %p103
      %p105 = scmp.ne.s32.totalorder %s96, %s97
      %p106 = scmp.eq.s32.totalorder %s32, 0
      %p107 = por %p105, %p106
      %p108 = scmp.ne.s32.totalorder %s96, %s97
      %p109 = scmp.eq.s32.totalorder %s33, 3
      %p110 = por %p108, %p109
      %p112 = scmp.ne.s32.totalorder %s97, %s111
      %p113 = scmp.eq.s32.totalorder %s33, 0
      %p114 = por %p112, %p113
      %s116 = sadd.s32 %s115, 1
      %p119 = scmp.eq.s32.totalorder %s27, 3
      %p120 = scmp.ne.s32.totalorder %s115, %s117
      %p121 = scmp.eq.s32.totalorder %s27, 0
      %p122 = por %p120, %p121
      %p123 = scmp.ne.s32.totalorder %s115, %s117
      %p124 = scmp.eq.s32.totalorder %s32, 3
      %p125 = por %p123, %p124
      %p126 = scmp.ne.s32.totalorder %s117, %s118
      %p127 = scmp.eq.s32.totalorder %s32, 0
      %p128 = por %p126, %p127
      %p129 = scmp.ne.s32.totalorder %s117, %s118
      %p130 = scmp.eq.s32.totalorder %s33, 3
      %p131 = por %p129, %p130
      %p133 = scmp.ne.s32.totalorder %s118, %s132
      %p134 = scmp.eq.s32.totalorder %s33, 0
      %p135 = por %p133, %p134
      %s137 = sadd.s32 %s136, 1
      %p140 = scmp.eq.s32.totalorder %s27, 3
      %p141 = scmp.ne.s32.totalorder %s136, %s138
      %p142 = scmp.eq.s32.totalorder %s27, 0
      %p143 = por %p141, %p142
      %p144 = scmp.ne.s32.totalorder %s136, %s138
      %p145 = scmp.eq.s32.totalorder %s32, 3
      %p146 = por %p144, %p145
      %p147 = scmp.ne.s32.totalorder %s138, %s139
      %p148 = scmp.eq.s32.totalorder %s32, 0
      %p149 = por %p147, %p148
      %p150 = scmp.ne.s32.totalorder %s138, %s139
      %p151 = scmp.eq.s32.totalorder %s33, 3
      %p152 = por %p150, %p151
      %p154 = scmp.ne.s32.totalorder %s139, %s153
      %p155 = scmp.eq.s32.totalorder %s33, 0
      %p156 = por %p154, %p155
      %s157 = ssub.s32 %s35, %s42
      %p158 = scmp.eq.s32.totalorder %s157, 0
      %s160 = sadd.s32 %s159, 1
      %s161 = scalar_select %p158, %s159, %s160
      %p164 = pneg %p158
      %p165 = scmp.eq.s32.totalorder %s27, 3
      %p166 = por %p164, %p165
      %p167 = scmp.ne.s32.totalorder %s159, %s162
      %p168 = scmp.eq.s32.totalorder %s27, 0
      %p169 = por %p167, %p168
      %p170 = scmp.ne.s32.totalorder %s159, %s162
      %p171 = scmp.eq.s32.totalorder %s32, 3
      %p172 = por %p170, %p171
      %p173 = scmp.ne.s32.totalorder %s162, %s163
      %p174 = scmp.eq.s32.totalorder %s32, 0
      %p175 = por %p173, %p174
      %p176 = scmp.ne.s32.totalorder %s162, %s163
      %p177 = scmp.eq.s32.totalorder %s33, 3
      %p178 = por %p176, %p177
      %p180 = scmp.ne.s32.totalorder %s163, %s179
      %p181 = scmp.eq.s32.totalorder %s33, 0
      %p182 = por %p180, %p181
      %s183 = ssub.s32 %s35, %s42
      %p184 = scmp.eq.s32.totalorder %s183, 0
      %s186 = sadd.s32 %s185, 1
      %s187 = scalar_select %p184, %s185, %s186
      %p190 = pneg %p184
      %p191 = scmp.eq.s32.totalorder %s27, 3
      %p192 = por %p190, %p191
      %p193 = scmp.ne.s32.totalorder %s185, %s188
      %p194 = scmp.eq.s32.totalorder %s27, 0
      %p195 = por %p193, %p194
      %p196 = scmp.ne.s32.totalorder %s185, %s188
      %p197 = scmp.eq.s32.totalorder %s32, 3
      %p198 = por %p196, %p197
      %p199 = scmp.ne.s32.totalorder %s188, %s189
      %p200 = scmp.eq.s32.totalorder %s32, 0
      %p201 = por %p199, %p200
      %p202 = scmp.ne.s32.totalorder %s188, %s189
      %p203 = scmp.eq.s32.totalorder %s33, 3
      %p204 = por %p202, %p203
      %p206 = scmp.ne.s32.totalorder %s189, %s205
      %p207 = scmp.eq.s32.totalorder %s33, 0
      %p208 = por %p206, %p207
      %s210 = sadd.s32 %s209, 1
      %p213 = scmp.eq.s32.totalorder %s27, 3
      %p214 = scmp.ne.s32.totalorder %s209, %s211
      %p215 = scmp.eq.s32.totalorder %s27, 0
      %p216 = por %p214, %p215
      %p217 = scmp.ne.s32.totalorder %s209, %s211
      %p218 = scmp.eq.s32.totalorder %s32, 3
      %p219 = por %p217, %p218
      %p220 = scmp.ne.s32.totalorder %s211, %s212
      %p221 = scmp.eq.s32.totalorder %s32, 0
      %p222 = por %p220, %p221
      %p223 = scmp.ne.s32.totalorder %s211, %s212
      %p224 = scmp.eq.s32.totalorder %s33, 3
      %p225 = por %p223, %p224
      %p227 = scmp.ne.s32.totalorder %s212, %s226
      %p228 = scmp.eq.s32.totalorder %s33, 0
      %p229 = por %p227, %p228
      %s231 = sadd.s32 %s230, 1
      %p234 = scmp.eq.s32.totalorder %s27, 3
      %p235 = scmp.ne.s32.totalorder %s230, %s232
      %p236 = scmp.eq.s32.totalorder %s27, 0
      %p237 = por %p235, %p236
      %p238 = scmp.ne.s32.totalorder %s230, %s232
      %p239 = scmp.eq.s32.totalorder %s32, 3
      %p240 = por %p238, %p239
      %p241 = scmp.ne.s32.totalorder %s232, %s233
      %p242 = scmp.eq.s32.totalorder %s32, 0
      %p243 = por %p241, %p242
      %p244 = scmp.ne.s32.totalorder %s232, %s233
      %p245 = scmp.eq.s32.totalorder %s33, 3
      %p246 = por %p244, %p245
      %p248 = scmp.ne.s32.totalorder %s233, %s247
      %p249 = scmp.eq.s32.totalorder %s33, 0
      %p250 = por %p248, %p249
      %s252 = sadd.s32 %s251, 1
      %p255 = scmp.eq.s32.totalorder %s27, 3
      %p256 = scmp.ne.s32.totalorder %s251, %s253
      %p257 = scmp.eq.s32.totalorder %s27, 0
      %p258 = por %p256, %p257
      %p259 = scmp.ne.s32.totalorder %s251, %s253
      %p260 = scmp.eq.s32.totalorder %s32, 3
      %p261 = por %p259, %p260
      %p262 = scmp.ne.s32.totalorder %s253, %s254
      %p263 = scmp.eq.s32.totalorder %s32, 0
      %p264 = por %p262, %p263
      %p265 = scmp.ne.s32.totalorder %s253, %s254
      %p266 = scmp.eq.s32.totalorder %s33, 3
      %p267 = por %p265, %p266
      %p269 = scmp.ne.s32.totalorder %s254, %s268
      %p270 = scmp.eq.s32.totalorder %s33, 0
      %p271 = por %p269, %p270
      %s273 = sadd.s32 %s272, 1
      %p276 = scmp.eq.s32.totalorder %s27, 3
      %p277 = scmp.ne.s32.totalorder %s272, %s274
      %p278 = scmp.eq.s32.totalorder %s27, 0
      %p279 = por %p277, %p278
      %p280 = scmp.ne.s32.totalorder %s272, %s274
      %p281 = scmp.eq.s32.totalorder %s32, 3
      %p282 = por %p280, %p281
      %p283 = scmp.ne.s32.totalorder %s274, %s275
      %p284 = scmp.eq.s32.totalorder %s32, 0
      %p285 = por %p283, %p284
      %p286 = scmp.ne.s32.totalorder %s274, %s275
      %p287 = scmp.eq.s32.totalorder %s33, 3
      %p288 = por %p286, %p287
      %p290 = scmp.ne.s32.totalorder %s275, %s289
      %p291 = scmp.eq.s32.totalorder %s33, 0
      %p292 = por %p290, %p291
      %s294 = sadd.s32 %s293, 1
      %p297 = scmp.eq.s32.totalorder %s27, 3
      %p298 = scmp.ne.s32.totalorder %s293, %s295
      %p299 = scmp.eq.s32.totalorder %s27, 0
      %p300 = por %p298, %p299
      %p301 = scmp.ne.s32.totalorder %s293, %s295
      %p302 = scmp.eq.s32.totalorder %s32, 3
      %p303 = por %p301, %p302
      %p304 = scmp.ne.s32.totalorder %s295, %s296
      %p305 = scmp.eq.s32.totalorder %s32, 0
      %p306 = por %p304, %p305
      %p307 = scmp.ne.s32.totalorder %s295, %s296
      %p308 = scmp.eq.s32.totalorder %s33, 3
      %p309 = por %p307, %p308
      %p311 = scmp.ne.s32.totalorder %s296, %s310
      %p312 = scmp.eq.s32.totalorder %s33, 0
      %p313 = por %p311, %p312
      %s314 = ssub.s32 %s34, %s46
      %s315 = ssub.s32 %s35, %s42
      %s316 = sor.u32 %s314, %s315
      %p317 = scmp.eq.s32.totalorder %s316, 0
      %s319 = sadd.s32 %s318, 1
      %s320 = scalar_select %p317, %s318, %s319
      %p323 = pneg %p317
      %p324 = scmp.eq.s32.totalorder %s27, 3
      %p325 = por %p323, %p324
      %p326 = scmp.ne.s32.totalorder %s318, %s321
      %p327 = scmp.eq.s32.totalorder %s27, 0
      %p328 = por %p326, %p327
      %p329 = scmp.ne.s32.totalorder %s318, %s321
      %p330 = scmp.eq.s32.totalorder %s32, 3
      %p331 = por %p329, %p330
      %p332 = scmp.ne.s32.totalorder %s321, %s322
      %p333 = scmp.eq.s32.totalorder %s32, 0
      %p334 = por %p332, %p333
      %p335 = scmp.ne.s32.totalorder %s321, %s322
      %p336 = scmp.eq.s32.totalorder %s33, 3
      %p337 = por %p335, %p336
      %p339 = scmp.ne.s32.totalorder %s322, %s338
      %p340 = scmp.eq.s32.totalorder %s33, 0
      %p341 = por %p339, %p340
      %p342 = scmp.le.s32.totalorder 1, %s27
      %p343 = scmp.lt.s32.totalorder %s27, 5
      %p344 = pnand %p342, %p343
      %p345 = pneg %p344
      // Predicated region
      $region9: #{tpu_custom_call.1} parent=5 // pred_check
        _
      $region10: #{tpu_custom_call.1} parent=5 // pred_check_branch
        %347 = sbr.rel (%p344) target = $region12
      $region11: #{tpu_custom_call.1} parent=5 // pred_region
        %s348 = ssub.s32 %s27, 1
        // Predicated region
        $region13: #{tpu_custom_call.1} parent=11 // pred_check
          %p349 = pneg %p86
        $region14: #{tpu_custom_call.1} parent=11 // pred_check_branch
          %351 = sbr.rel (%p349) target = $region16
        $region15: #{tpu_custom_call.1} parent=11 // pred_region
          _
        $region16: #{tpu_custom_call.1} parent=11 // pred_fallthru
          _
        // Predicated region
        $region17: #{tpu_custom_call.1} parent=11 // pred_check
          %p352 = pneg %p107
        $region18: #{tpu_custom_call.1} parent=11 // pred_check_branch
          %354 = sbr.rel (%p352) target = $region20
        $region19: #{tpu_custom_call.1} parent=11 // pred_region
          %s356 = ssub.s32 256, 256
          %357 = vsyncadd [#allocation7], %s356
          %s358 = sshll.u32 [#allocation6], 4
          %s359 = int_to_ptr.vmem [resolvable:$true] %s358
          %364 = dma.hbm_to_vmem [thread:$0]  %s2, 256, %s359, [#allocation7], 64, 64, 4
        $region20: #{tpu_custom_call.1} parent=11 // pred_fallthru
          _
        // Predicated region
        $region21: #{tpu_custom_call.1} parent=11 // pred_check
          %p365 = pneg %p128
        $region22: #{tpu_custom_call.1} parent=11 // pred_check_branch
          %367 = sbr.rel (%p365) target = $region24
        $region23: #{tpu_custom_call.1} parent=11 // pred_region
          %s369 = ssub.s32 256, 256
          %370 = vsyncadd [#allocation7], %s369
          %s371 = sshll.u32 [#allocation8], 4
          %s372 = int_to_ptr.vmem [resolvable:$true] %s371
          %377 = dma.hbm_to_vmem [thread:$0]  %s3, 256, %s372, [#allocation7], 64, 64, 4
        $region24: #{tpu_custom_call.1} parent=11 // pred_fallthru
          _
        // Predicated region
        $region25: #{tpu_custom_call.1} parent=11 // pred_check
          %p378 = pneg %p149
        $region26: #{tpu_custom_call.1} parent=11 // pred_check_branch
          %380 = sbr.rel (%p378) target = $region28
        $region27: #{tpu_custom_call.1} parent=11 // pred_region
          %s382 = ssub.s32 256, 256
          %383 = vsyncadd [#allocation10], %s382
          %s384 = sshll.u32 [#allocation9], 4
          %s385 = int_to_ptr.vmem [resolvable:$true] %s384
          %390 = dma.hbm_to_vmem [thread:$0]  %s4, 256, %s385, [#allocation10], 64, 64, 4
        $region28: #{tpu_custom_call.1} parent=11 // pred_fallthru
          _
        // Predicated region
        $region29: #{tpu_custom_call.1} parent=11 // pred_check
          %p391 = pneg %p222
        $region30: #{tpu_custom_call.1} parent=11 // pred_check_branch
          %393 = sbr.rel (%p391) target = $region32
        $region31: #{tpu_custom_call.1} parent=11 // pred_region
          %s395 = ssub.s32 256, 256
          %396 = vsyncadd [#allocation7], %s395
          %s397 = sshll.u32 [#allocation12], 4
          %s398 = int_to_ptr.vmem [resolvable:$true] %s397
          %403 = dma.hbm_to_vmem [thread:$0]  %s7, 256, %s398, [#allocation7], 128, 128, 8
        $region32: #{tpu_custom_call.1} parent=11 // pred_fallthru
          _
        // Predicated region
        $region33: #{tpu_custom_call.1} parent=11 // pred_check
          %p404 = pneg %p243
        $region34: #{tpu_custom_call.1} parent=11 // pred_check_branch
          %406 = sbr.rel (%p404) target = $region36
        $region35: #{tpu_custom_call.1} parent=11 // pred_region
          %s408 = ssub.s32 256, 256
          %409 = vsyncadd [#allocation10], %s408
          %s410 = sshll.u32 [#allocation13], 4
          %s411 = int_to_ptr.vmem [resolvable:$true] %s410
          %416 = dma.hbm_to_vmem [thread:$0]  %s8, 256, %s411, [#allocation10], 128, 128, 8
        $region36: #{tpu_custom_call.1} parent=11 // pred_fallthru
          _
        // Predicated region
        $region37: #{tpu_custom_call.1} parent=11 // pred_check
          %p417 = pneg %p264
        $region38: #{tpu_custom_call.1} parent=11 // pred_check_branch
          %419 = sbr.rel (%p417) target = $region40
        $region39: #{tpu_custom_call.1} parent=11 // pred_region
          _
        $region40: #{tpu_custom_call.1} parent=11 // pred_fallthru
          _
        // Predicated region
        $region41: #{tpu_custom_call.1} parent=11 // pred_check
          %p420 = pneg %p285
        $region42: #{tpu_custom_call.1} parent=11 // pred_check_branch
          %422 = sbr.rel (%p420) target = $region44
        $region43: #{tpu_custom_call.1} parent=11 // pred_region
          _
        $region44: #{tpu_custom_call.1} parent=11 // pred_fallthru
          _
        // Predicated region
        $region45: #{tpu_custom_call.1} parent=11 // pred_check
          %p423 = pneg %p306
        $region46: #{tpu_custom_call.1} parent=11 // pred_check_branch
          %425 = sbr.rel (%p423) target = $region48
        $region47: #{tpu_custom_call.1} parent=11 // pred_region
          %s427 = ssub.s32 256, 256
          %428 = vsyncadd [#allocation15], %s427
          %s429 = sshll.u32 [#allocation14], 4
          %s430 = int_to_ptr.vmem [resolvable:$true] %s429
          %435 = dma.hbm_to_vmem [thread:$0]  %s11, 256, %s430, [#allocation15], 64, 64, 4
        $region48: #{tpu_custom_call.1} parent=11 // pred_fallthru
          _
      $region12: #{tpu_custom_call.1} parent=5 // pred_fallthru
        _
      %p436 = scmp.lt.s32.totalorder %s27, 4
      // Predicated region
      $region49: #{tpu_custom_call.1} parent=5 // pred_check
        %p437 = pneg %p436
      $region50: #{tpu_custom_call.1} parent=5 // pred_check_branch
        %439 = sbr.rel (%p437) target = $region52
      $region51: #{tpu_custom_call.1} parent=5 // pred_region
        // Predicated region
        $region53: #{tpu_custom_call.1} parent=51 // pred_check
          %p440 = pneg %p59
        $region54: #{tpu_custom_call.1} parent=51 // pred_check_branch
          %442 = sbr.rel (%p440) target = $region56
        $region55: #{tpu_custom_call.1} parent=51 // pred_region
          %s443 = sand.u32 %s27, 1
          %s444 = scalar_lea.sflag [#allocation4], %s443
          %s445 = sand.u32 %s49, 1
          %s446 = smul.addr %s445, 16
          %s447 = scalar_lea.vmem [#allocation3], %s446
          %s449 = ssub.s32 256, 256
          %450 = vsyncadd %s444, %s449
          %s451 = smul.addr %s34, 2
          %s452 = smul.addr %s451, 128
          %s453 = scalar_lea.hbm %s0, %s452
          %s454 = sshll.u32 %s447, 4
          %s455 = int_to_ptr.vmem [resolvable:$true] %s454
          %460 = dma.hbm_to_vmem [thread:$0]  %s453, 256, %s455, %s444, 128, 128, 8
        $region56: #{tpu_custom_call.1} parent=51 // pred_fallthru
          _
        // Predicated region
        $region57: #{tpu_custom_call.1} parent=51 // pred_check
          %p461 = pneg %p169
        $region58: #{tpu_custom_call.1} parent=51 // pred_check_branch
          %463 = sbr.rel (%p461) target = $region60
        $region59: #{tpu_custom_call.1} parent=51 // pred_region
          %p464 = scmp.lt.s32.totalorder %s35, 1
          %s465 = scalar_select %p464, %s35, 1
          %s466 = smul.addr %s465, 8
          %s467 = scalar_lea.vmem %s5, %s466
        $region60: #{tpu_custom_call.1} parent=51 // pred_fallthru
          _
        // Predicated region
        $region61: #{tpu_custom_call.1} parent=51 // pred_check
          %p468 = pneg %p195
        $region62: #{tpu_custom_call.1} parent=51 // pred_check_branch
          %470 = sbr.rel (%p468) target = $region64
        $region63: #{tpu_custom_call.1} parent=51 // pred_region
          %s471 = sand.u32 %s27, 1
          %s472 = scalar_lea.sflag [#allocation4], %s471
          %s473 = sand.u32 %s185, 1
          %s474 = smul.addr %s473, 8
          %s475 = scalar_lea.vmem [#allocation11], %s474
          %s477 = ssub.s32 128, 128
          %478 = vsyncadd %s472, %s477
          %s479 = smul.addr %s35, 128
          %s480 = scalar_lea.hbm %s6, %s479
          %s482 = sshll.u32 %s475, 4
          %s483 = int_to_ptr.vmem [resolvable:$true] %s482
          %485 = dma.hbm_to_vmem [thread:$0]  %s480, 128, %s483, %s472
        $region64: #{tpu_custom_call.1} parent=51 // pred_fallthru
          _
      $region52: #{tpu_custom_call.1} parent=5 // pred_fallthru
        _
      %p486 = scmp.le.s32.totalorder 1, %s27
      %p487 = scmp.lt.s32.totalorder %s27, 5
      %p488 = pnand %p486, %p487
      %p489 = pneg %p488
      // Predicated region
      $region65: #{tpu_custom_call.1} parent=5 // pred_check
        _
      $region66: #{tpu_custom_call.1} parent=5 // pred_check_branch
        %491 = sbr.rel (%p488) target = $region68
      $region67: #{tpu_custom_call.1} parent=5 // pred_region
        %s492 = ssub.s32 %s27, 1
        %s493 = sand.u32 %s32, 1
        %s494 = scalar_lea.sflag [#allocation4], %s493
        %s495 = sand.u32 %s52, 1
        %s496 = smul.addr %s495, 16
        %s497 = scalar_lea.vmem [#allocation3], %s496
        // Predicated region
        $region69: #{tpu_custom_call.1} parent=67 // pred_check
          %p498 = pneg %p65
        $region70: #{tpu_custom_call.1} parent=67 // pred_check_branch
          %500 = sbr.rel (%p498) target = $region72
        $region71: #{tpu_custom_call.1} parent=67 // pred_region
          %501 = dma.done %s494, 256
        $region72: #{tpu_custom_call.1} parent=67 // pred_fallthru
          _
        // Predicated region
        $region73: #{tpu_custom_call.1} parent=67 // pred_check
          %p502 = pneg %p107
        $region74: #{tpu_custom_call.1} parent=67 // pred_check_branch
          %504 = sbr.rel (%p502) target = $region76
        $region75: #{tpu_custom_call.1} parent=67 // pred_region
          %505 = dma.done [#allocation7], 256
        $region76: #{tpu_custom_call.1} parent=67 // pred_fallthru
          _
        // Predicated region
        $region77: #{tpu_custom_call.1} parent=67 // pred_check
          %p506 = pneg %p128
        $region78: #{tpu_custom_call.1} parent=67 // pred_check_branch
          %508 = sbr.rel (%p506) target = $region80
        $region79: #{tpu_custom_call.1} parent=67 // pred_region
          %509 = dma.done [#allocation7], 256
        $region80: #{tpu_custom_call.1} parent=67 // pred_fallthru
          _
        // Predicated region
        $region81: #{tpu_custom_call.1} parent=67 // pred_check
          %p510 = pneg %p149
        $region82: #{tpu_custom_call.1} parent=67 // pred_check_branch
          %512 = sbr.rel (%p510) target = $region84
        $region83: #{tpu_custom_call.1} parent=67 // pred_region
          %513 = dma.done [#allocation10], 256
        $region84: #{tpu_custom_call.1} parent=67 // pred_fallthru
          _
        %s514 = sand.u32 %s32, 1
        %s515 = scalar_lea.sflag [#allocation4], %s514
        %s516 = sand.u32 %s188, 1
        %s517 = smul.addr %s516, 8
        %s518 = scalar_lea.vmem [#allocation11], %s517
        // Predicated region
        $region85: #{tpu_custom_call.1} parent=67 // pred_check
          %p519 = pneg %p201
        $region86: #{tpu_custom_call.1} parent=67 // pred_check_branch
          %521 = sbr.rel (%p519) target = $region88
        $region87: #{tpu_custom_call.1} parent=67 // pred_region
          %522 = dma.done %s515, 128
        $region88: #{tpu_custom_call.1} parent=67 // pred_fallthru
          _
        // Predicated region
        $region89: #{tpu_custom_call.1} parent=67 // pred_check
          %p523 = pneg %p222
        $region90: #{tpu_custom_call.1} parent=67 // pred_check_branch
          %525 = sbr.rel (%p523) target = $region92
        $region91: #{tpu_custom_call.1} parent=67 // pred_region
          %526 = dma.done [#allocation7], 256
        $region92: #{tpu_custom_call.1} parent=67 // pred_fallthru
          _
        // Predicated region
        $region93: #{tpu_custom_call.1} parent=67 // pred_check
          %p527 = pneg %p243
        $region94: #{tpu_custom_call.1} parent=67 // pred_check_branch
          %529 = sbr.rel (%p527) target = $region96
        $region95: #{tpu_custom_call.1} parent=67 // pred_region
          %530 = dma.done [#allocation10], 256
        $region96: #{tpu_custom_call.1} parent=67 // pred_fallthru
          _
        // Predicated region
        $region97: #{tpu_custom_call.1} parent=67 // pred_check
          %p531 = pneg %p306
        $region98: #{tpu_custom_call.1} parent=67 // pred_check_branch
          %533 = sbr.rel (%p531) target = $region100
        $region99: #{tpu_custom_call.1} parent=67 // pred_region
          %534 = dma.done [#allocation15], 256
        $region100: #{tpu_custom_call.1} parent=67 // pred_fallthru
          _
        %s535 = sand.u32 %s32, 1
        %s536 = scalar_lea.sflag [#allocation4], %s535
        %s537 = sand.u32 %s52, 1
        %s538 = smul.addr %s537, 16
        %s539 = scalar_lea.vmem [#allocation3], %s538
        %p540 = pneg %p65
        %p541 = pneg %p62
        %p542 = pneg %p86
        %p543 = pneg %p83
        %p544 = pneg %p107
        %p545 = pneg %p104
        %p546 = pneg %p128
        %p547 = pneg %p125
        %p548 = pneg %p149
        %p549 = pneg %p146
        %p550 = scmp.lt.s32.totalorder %s37, 1
        %s551 = scalar_select %p550, %s37, 1
        %s552 = smul.addr %s551, 8
        %s553 = scalar_lea.vmem %s5, %s552
        %p554 = pneg %p175
        %p555 = pneg %p172
        %s556 = sand.u32 %s32, 1
        %s557 = scalar_lea.sflag [#allocation4], %s556
        %s558 = sand.u32 %s188, 1
        %s559 = smul.addr %s558, 8
        %s560 = scalar_lea.vmem [#allocation11], %s559
        %p561 = pneg %p201
        %p562 = pneg %p198
        %p563 = pneg %p222
        %p564 = pneg %p219
        %p565 = pneg %p243
        %p566 = pneg %p240
        %p567 = pneg %p264
        %p568 = pneg %p261
        %p569 = pneg %p285
        %p570 = pneg %p282
        %p571 = pneg %p306
        %p572 = pneg %p303
        %p573 = pneg %p334
        %p574 = pneg %p331
        %s575 = sand.u32 %s321, 1
        %s576 = scalar_lea.sflag [#allocation5], %s575
        %s577 = sand.u32 %s321, 1
        %s578 = smul.addr %s577, 8
        %s579 = scalar_lea.vmem [#allocation16], %s578
        %p580 = scmp.lt.s32.totalorder %s37, 1
        %s581 = scalar_select %p580, %s37, 1
        %s582 = smul.addr %s581, 8
        %s583 = scalar_lea.vmem %s5, %s582
        %s585 = smul.u32 %s37, 8
        %v586 = vld [vmem:[%s497] sm:$0xff]
        %v587 = vld [vmem:[%s497 + $0x8] sm:$0xff]
        %v588 = vmul.f32 %v586, %v586
        %v589 = vmul.f32 %v587, %v587
        %vm590 = vcmask 261120
        %v591 = vsel %vm590, %v588, 0.0
        %592 = vadd.xlane.f32.xlu0 %v591
        %v593 = vpop.xlane.xlu0 %592
        %v594 = vsel %vm590, %v589, 0.0
        %595 = vadd.xlane.f32.xlu0 %v594
        %v596 = vpop.xlane.xlu0 %595
        %v597 = vrcp.pop 32.0
        %v598 = vmul.f32 %v593, %v597
        %v599 = vmul.f32 %v596, %v597
        %v600 = vadd.f32 %v598, 1e-05
        %v601 = vadd.f32 %v599, 1e-05
        %v602 = vrsqrt.pop %v600
        %v603 = vrsqrt.pop %v601
        %v604 = vmul.f32 %v586, %v602
        %v605 = vmul.f32 %v587, %v603
        %v606 = vld [vmem:[%s1] sm:$0x1]
        %v608 = vlaneseq
        %v609 = vshrl.u32 %v608, 7
        %v610 = vsub.s32 0, %v609
        %v611 = vrot.slane %v606, %v610
        %v613 = vmul.f32 %v604, %v611
        %v614 = vmul.f32 %v605, %v611
        %s615 = scalar_lea.vmem %s497, %s585 [#allocation3]
        %v616 = vld [vmem:[%s615] sm:$0xff]
        %v617 = vmul.f32 %v616, %v616
        %v618 = vsel %vm590, %v617, 0.0
        %619 = vadd.xlane.f32.xlu0 %v618
        %v620 = vpop.xlane.xlu0 %619
        %v621 = vmul.f32 %v620, %v597
        %v622 = vadd.f32 %v621, 1e-05
        %v623 = vrsqrt.pop %v622
        %v624 = vmul.f32 %v616, %v623
        %v625 = vmul.f32 %v624, %v611
        %v626 = vpack.c.bf16 %v614, %v613
        %v627 = vld [vmem:[#allocation8] sm:$0xf]
        %v628 = vld [vmem:[#allocation8 + $0x4] sm:$0xf]
        %v629 = vld [vmem:[#allocation8 + $0x8] sm:$0xf]
        %v630 = vld [vmem:[#allocation8 + $0xc] sm:$0xf]
        %v635 = vunpack.c.l.b16 %v627
        %v636 = vunpack.c.l.b16 %v628
        %v637 = vunpack.c.l.b16 %v629
        %v638 = vunpack.c.l.b16 %v630
        %v639 = vpack.c.b16 %v636, %v635
        %v640 = vpack.c.b16 %v638, %v637
        %v644 = vsel %vm590, %v626, 0
        %646 = vmatprep.subr.bf16.mxu0 0
        %647 = vmatpush1.bf16.msra.mxu0 %v639
        %648 = vmatprep.subr.bf16.mxu0 0
        %649 = vmatpush1.bf16.msra.mxu0 %v640
        %650 = vmatprep.subr.bf16.mxu0 0
        %651 = vmatpush1.bf16.msra.mxu0 0
        %652 = vmatprep.subr.bf16.mxu0 0
        %653 = vmatpush1.bf16.msra.mxu0 0
        %654 = vmatprep.subr.bf16.mxu0 0
        %655 = vmatpush1.bf16.msra.mxu0 0
        %656 = vmatprep.subr.bf16.mxu0 0
        %657 = vmatpush1.bf16.msra.mxu0 0
        %658 = vmatprep.subr.bf16.mxu0 0
        %659 = vmatpush1.bf16.msra.mxu0 0
        %660 = vmatprep.subr.bf16.mxu0 0
        %661 = vmatpush1.bf16.msra.mxu0 0
        %662 = vmatprep.subr.bf16.mxu0 0
        %663 = vmatpush1.bf16.msra.mxu0 0
        %664 = vmatprep.subr.bf16.mxu0 0
        %665 = vmatpush1.bf16.msra.mxu0 0
        %666 = vmatprep.subr.bf16.mxu0 0
        %667 = vmatpush1.bf16.msra.mxu0 0
        %668 = vmatprep.subr.bf16.mxu0 0
        %669 = vmatpush1.bf16.msra.mxu0 0
        %670 = vmatprep.subr.bf16.mxu0 0
        %671 = vmatpush1.bf16.msra.mxu0 0
        %672 = vmatprep.subr.bf16.mxu0 0
        %673 = vmatpush1.bf16.msra.mxu0 0
        %674 = vmatprep.subr.bf16.mxu0 0
        %675 = vmatpush1.bf16.msra.mxu0 0
        %676 = vmatprep.subr.bf16.mxu0 0
        %677 = vmatpush1.bf16.msra.mxu0 0
        %678 = vmatprep.mubr.bf16.mxu0 0
        %679 = vmatmul.mubr.bf16.gmra.mrb[0].mxu0 %v644
        %v680 = vpop.f32.mrb[0].mxu0
        %v681 = vadd.f32 0.0, %v680
        %v682 = vpop.f32.mrb[0].mxu0
        %v683 = vpop.f32.mrb[0].mxu0
        %v684 = vadd.f32 0.0, %v683
        %v685 = vpop.f32.mrb[0].mxu0
        %686 = vdwg.mxu0
        %v687 = vpack.c.bf16 %v625, %v625
        %v688 = vld [vmem:[#allocation6] sm:$0xf]
        %v689 = vld [vmem:[#allocation6 + $0x4] sm:$0xf]
        %v690 = vld [vmem:[#allocation6 + $0x8] sm:$0xf]
        %v691 = vld [vmem:[#allocation6 + $0xc] sm:$0xf]
        %v696 = vunpack.c.l.b16 %v688
        %v697 = vunpack.c.l.b16 %v689
        %v698 = vunpack.c.l.b16 %v690
        %v699 = vunpack.c.l.b16 %v691
        %v700 = vpack.c.b16 %v697, %v696
        %v701 = vpack.c.b16 %v699, %v698
        %v705 = vsel %vm590, %v687, 0
        %707 = vmatprep.subr.bf16.mxu0 0
        %708 = vmatpush1.bf16.msra.mxu0 %v700
        %709 = vmatprep.subr.bf16.mxu0 0
        %710 = vmatpush1.bf16.msra.mxu0 %v701
        %711 = vmatprep.subr.bf16.mxu0 0
        %712 = vmatpush1.bf16.msra.mxu0 0
        %713 = vmatprep.subr.bf16.mxu0 0
        %714 = vmatpush1.bf16.msra.mxu0 0
        %715 = vmatprep.subr.bf16.mxu0 0
        %716 = vmatpush1.bf16.msra.mxu0 0
        %717 = vmatprep.subr.bf16.mxu0 0
        %718 = vmatpush1.bf16.msra.mxu0 0
        %719 = vmatprep.subr.bf16.mxu0 0
        %720 = vmatpush1.bf16.msra.mxu0 0
        %721 = vmatprep.subr.bf16.mxu0 0
        %722 = vmatpush1.bf16.msra.mxu0 0
        %723 = vmatprep.subr.bf16.mxu0 0
        %724 = vmatpush1.bf16.msra.mxu0 0
        %725 = vmatprep.subr.bf16.mxu0 0
        %726 = vmatpush1.bf16.msra.mxu0 0
        %727 = vmatprep.subr.bf16.mxu0 0
        %728 = vmatpush1.bf16.msra.mxu0 0
        %729 = vmatprep.subr.bf16.mxu0 0
        %730 = vmatpush1.bf16.msra.mxu0 0
        %731 = vmatprep.subr.bf16.mxu0 0
        %732 = vmatpush1.bf16.msra.mxu0 0
        %733 = vmatprep.subr.bf16.mxu0 0
        %734 = vmatpush1.bf16.msra.mxu0 0
        %735 = vmatprep.subr.bf16.mxu0 0
        %736 = vmatpush1.bf16.msra.mxu0 0
        %737 = vmatprep.subr.bf16.mxu0 0
        %738 = vmatpush1.bf16.msra.mxu0 0
        %739 = vmatprep.mubr.bf16.mxu0 0
        %740 = vmatmul.mubr.bf16.gmra.mrb[0].mxu0 %v705
        %v741 = vpop.f32.mrb[0].mxu0
        %v742 = vadd.f32 0.0, %v741
        %v743 = vpop.f32.mrb[0].mxu0
        %v744 = vpop.f32.mrb[0].mxu0
        %v745 = vpop.f32.mrb[0].mxu0
        %746 = vdwg.mxu0
        %v747 = vld [vmem:[%s583] sm:$0xff]
        %v748 = vmul.f32 %v742, %v747
        %v749 = vld [vmem:[%s518] sm:$0xff]
        %751 = vrot.lane.b32.xlu0 %v749, 32
        %v752 = vpop.permute.xlu0 %751
        %v754 = vmul.f32 %v742, %v752
        %756 = vrot.lane.b32.xlu0 %v754, 96
        %v757 = vpop.permute.xlu0 %756
        %v759 = vadd.f32 %v748, %v757
        %v760 = vld [vmem:[#allocation12] sm:$0xff]
        %v761 = vld [vmem:[#allocation12 + $0x8] sm:$0xff]
        %v762 = vmul.f32 %v681, %v760
        %v763 = vmul.f32 %v684, %v761
        %v764 = vld [vmem:[#allocation13] sm:$0xff]
        %v765 = vld [vmem:[#allocation13 + $0x8] sm:$0xff]
        %768 = vrot.lane.b32.xlu0 %v764, 32
        %v769 = vpop.permute.xlu0 %768
        %770 = vrot.lane.b32.xlu0 %v765, 32
        %v771 = vpop.permute.xlu0 %770
        %v774 = vmul.f32 %v681, %v769
        %v775 = vmul.f32 %v684, %v771
        %778 = vrot.lane.b32.xlu0 %v774, 96
        %v779 = vpop.permute.xlu0 %778
        %780 = vrot.lane.b32.xlu0 %v775, 96
        %v781 = vpop.permute.xlu0 %780
        %v784 = vadd.f32 %v762, %v779
        %v785 = vadd.f32 %v763, %v781
        %v786 = vlaneseq
        %v787 = vshrl.u32 %v786, 7
        %v788 = vstv %s585
        %v789 = vadd.s32 %v788, %v787
        %v790 = vlaneseq
        %v791 = vand.u32 %v790, 127
        %vm792 = vcmp.gt.s32.totalorder %v791, %v789
        %v793 = vpack.c.bf16 %v759, %v759
        %v794 = vpack.c.bf16 %v785, %v784
        %v795 = vpack.c.bf16 %v684, %v681
        %vm796 = vcmask 64512
        %v798 = vsel %vm796, %v793, 0
        %v801 = vsel %vm796, %v794, 0
        %803 = vmatprep.subr.bf16.mxu0 0
        %804 = vmatpush1.bf16.xpose.msra.mxu0 %v801
        %805 = vmatprep.subr.bf16.mxu0 0
        %806 = vmatpush1.bf16.xpose.msra.mxu0 0
        %807 = vmatprep.subr.bf16.mxu0 0
        %808 = vmatpush1.bf16.xpose.msra.mxu0 0
        %809 = vmatprep.subr.bf16.mxu0 0
        %810 = vmatpush1.bf16.xpose.msra.mxu0 0
        %811 = vmatprep.subr.bf16.mxu0 0
        %812 = vmatpush1.bf16.xpose.msra.mxu0 0
        %813 = vmatprep.subr.bf16.mxu0 0
        %814 = vmatpush1.bf16.xpose.msra.mxu0 0
        %815 = vmatprep.subr.bf16.mxu0 0
        %816 = vmatpush1.bf16.xpose.msra.mxu0 0
        %817 = vmatprep.subr.bf16.mxu0 0
        %818 = vmatpush1.bf16.xpose.msra.mxu0 0
        %819 = vmatprep.subr.bf16.mxu0 0
        %820 = vmatpush1.bf16.xpose.msra.mxu0 0
        %821 = vmatprep.subr.bf16.mxu0 0
        %822 = vmatpush1.bf16.xpose.msra.mxu0 0
        %823 = vmatprep.subr.bf16.mxu0 0
        %824 = vmatpush1.bf16.xpose.msra.mxu0 0
        %825 = vmatprep.subr.bf16.mxu0 0
        %826 = vmatpush1.bf16.xpose.msra.mxu0 0
        %827 = vmatprep.subr.bf16.mxu0 0
        %828 = vmatpush1.bf16.xpose.msra.mxu0 0
        %829 = vmatprep.subr.bf16.mxu0 0
        %830 = vmatpush1.bf16.xpose.msra.mxu0 0
        %831 = vmatprep.subr.bf16.mxu0 0
        %832 = vmatpush1.bf16.xpose.msra.mxu0 0
        %833 = vmatprep.subr.bf16.mxu0 0
        %834 = vmatpush1.bf16.xpose.msra.mxu0 0
        %835 = vmatprep.mubr.bf16.mxu0 0
        %836 = vmatmul.mubr.bf16.gmra.mrb[0].mxu0 %v798
        %v837 = vpop.f32.mrb[0].mxu0
        %v838 = vadd.f32 0.0, %v837
        %v839 = vpop.f32.mrb[0].mxu0
        %v840 = vpop.f32.mrb[0].mxu0
        %v841 = vpop.f32.mrb[0].mxu0
        %842 = vdwg.mxu0
        %v843 = vsel %vm792, -1e+30, %v838
        %vm844 = vcmask 130048
        %v845 = vsel %vm844, %v843, -inf
        %846 = vmax.xlane.f32.xlu0 %v845
        %v847 = vpop.xlane.xlu0 %846
        %v848 = vsub.f32 %v843, %v847
        %v849 = vmul.f32 %v848, 1.442695
        %v850 = vpow.pop %v849
        %v851 = vsel %vm844, %v850, 0.0
        %852 = vadd.xlane.f32.xlu0 %v851
        %v853 = vpop.xlane.xlu0 %852
        %v854 = vrcp.pop %v853
        %v855 = vmul.f32 %v850, %v854
        %v856 = vpack.c.bf16 %v855, %v855
        %858 = vrot.lane.b32.xlu0 %v795, 64
        %v859 = vpop.permute.xlu0 %858
        %v862 = vsel %vm844, %v856, 0
        %864 = vmatprep.subr.bf16.mxu0 0
        %865 = vmatpush1.bf16.msra.mxu0 %v859
        %866 = vmatprep.subr.bf16.mxu0 0
        %867 = vmatpush1.bf16.msra.mxu0 0
        %868 = vmatprep.subr.bf16.mxu0 0
        %869 = vmatpush1.bf16.msra.mxu0 0
        %870 = vmatprep.subr.bf16.mxu0 0
        %871 = vmatpush1.bf16.msra.mxu0 0
        %872 = vmatprep.subr.bf16.mxu0 0
        %873 = vmatpush1.bf16.msra.mxu0 0
        %874 = vmatprep.subr.bf16.mxu0 0
        %875 = vmatpush1.bf16.msra.mxu0 0
        %876 = vmatprep.subr.bf16.mxu0 0
        %877 = vmatpush1.bf16.msra.mxu0 0
        %878 = vmatprep.subr.bf16.mxu0 0
        %879 = vmatpush1.bf16.msra.mxu0 0
        %880 = vmatprep.subr.bf16.mxu0 0
        %881 = vmatpush1.bf16.msra.mxu0 0
        %882 = vmatprep.subr.bf16.mxu0 0
        %883 = vmatpush1.bf16.msra.mxu0 0
        %884 = vmatprep.subr.bf16.mxu0 0
        %885 = vmatpush1.bf16.msra.mxu0 0
        %886 = vmatprep.subr.bf16.mxu0 0
        %887 = vmatpush1.bf16.msra.mxu0 0
        %888 = vmatprep.subr.bf16.mxu0 0
        %889 = vmatpush1.bf16.msra.mxu0 0
        %890 = vmatprep.subr.bf16.mxu0 0
        %891 = vmatpush1.bf16.msra.mxu0 0
        %892 = vmatprep.subr.bf16.mxu0 0
        %893 = vmatpush1.bf16.msra.mxu0 0
        %894 = vmatprep.subr.bf16.mxu0 0
        %895 = vmatpush1.bf16.msra.mxu0 0
        %896 = vmatprep.mubr.bf16.mxu0 0
        %897 = vmatmul.mubr.bf16.gmra.mrb[0].mxu0 %v862
        %v898 = vpop.f32.mrb[0].mxu0
        %v899 = vadd.f32 0.0, %v898
        %v900 = vpop.f32.mrb[0].mxu0
        %v901 = vpop.f32.mrb[0].mxu0
        %v902 = vpop.f32.mrb[0].mxu0
        %903 = vdwg.mxu0
        %v904 = vpack.c.bf16 %v899, %v899
        %vm905 = vcmask 60416
        %906 = vst.msk [vmem:[#allocation2] sm:$0xf] %vm905, %v904
        %908 = vrot.lane.b32.xlu0 %v793, 120
        %v909 = vpop.permute.xlu0 %908
        %911 = vrot.lane.b32.xlu0 %v794, 120
        %v912 = vpop.permute.xlu0 %911
        %v914 = vsel %vm796, %v909, 0
        %v917 = vsel %vm796, %v912, 0
        %919 = vmatprep.subr.bf16.mxu0 0
        %920 = vmatpush1.bf16.xpose.msra.mxu0 %v917
        %921 = vmatprep.subr.bf16.mxu0 0
        %922 = vmatpush1.bf16.xpose.msra.mxu0 0
        %923 = vmatprep.subr.bf16.mxu0 0
        %924 = vmatpush1.bf16.xpose.msra.mxu0 0
        %925 = vmatprep.subr.bf16.mxu0 0
        %926 = vmatpush1.bf16.xpose.msra.mxu0 0
        %927 = vmatprep.subr.bf16.mxu0 0
        %928 = vmatpush1.bf16.xpose.msra.mxu0 0
        %929 = vmatprep.subr.bf16.mxu0 0
        %930 = vmatpush1.bf16.xpose.msra.mxu0 0
        %931 = vmatprep.subr.bf16.mxu0 0
        %932 = vmatpush1.bf16.xpose.msra.mxu0 0
        %933 = vmatprep.subr.bf16.mxu0 0
        %934 = vmatpush1.bf16.xpose.msra.mxu0 0
        %935 = vmatprep.subr.bf16.mxu0 0
        %936 = vmatpush1.bf16.xpose.msra.mxu0 0
        %937 = vmatprep.subr.bf16.mxu0 0
        %938 = vmatpush1.bf16.xpose.msra.mxu0 0
        %939 = vmatprep.subr.bf16.mxu0 0
        %940 = vmatpush1.bf16.xpose.msra.mxu0 0
        %941 = vmatprep.subr.bf16.mxu0 0
        %942 = vmatpush1.bf16.xpose.msra.mxu0 0
        %943 = vmatprep.subr.bf16.mxu0 0
        %944 = vmatpush1.bf16.xpose.msra.mxu0 0
        %945 = vmatprep.subr.bf16.mxu0 0
        %946 = vmatpush1.bf16.xpose.msra.mxu0 0
        %947 = vmatprep.subr.bf16.mxu0 0
        %948 = vmatpush1.bf16.xpose.msra.mxu0 0
        %949 = vmatprep.subr.bf16.mxu0 0
        %950 = vmatpush1.bf16.xpose.msra.mxu0 0
        %951 = vmatprep.mubr.bf16.mxu0 0
        %952 = vmatmul.mubr.bf16.gmra.mrb[0].mxu0 %v914
        %v953 = vpop.f32.mrb[0].mxu0
        %v954 = vadd.f32 0.0, %v953
        %v955 = vpop.f32.mrb[0].mxu0
        %v956 = vpop.f32.mrb[0].mxu0
        %v957 = vpop.f32.mrb[0].mxu0
        %958 = vdwg.mxu0
        %v959 = vsel %vm792, -1e+30, %v954
        %v960 = vsel %vm844, %v959, -inf
        %961 = vmax.xlane.f32.xlu0 %v960
        %v962 = vpop.xlane.xlu0 %961
        %v963 = vsub.f32 %v959, %v962
        %v964 = vmul.f32 %v963, 1.442695
        %v965 = vpow.pop %v964
        %v966 = vsel %vm844, %v965, 0.0
        %967 = vadd.xlane.f32.xlu0 %v966
        %v968 = vpop.xlane.xlu0 %967
        %v969 = vrcp.pop %v968
        %v970 = vmul.f32 %v965, %v969
        %v971 = vpack.c.bf16 %v970, %v970
        %972 = vrot.lane.b32.xlu0 %v795, 56
        %v973 = vpop.permute.xlu0 %972
        %v976 = vsel %vm844, %v971, 0
        %978 = vmatprep.subr.bf16.mxu0 0
        %979 = vmatpush1.bf16.msra.mxu0 %v973
        %980 = vmatprep.subr.bf16.mxu0 0
        %981 = vmatpush1.bf16.msra.mxu0 0
        %982 = vmatprep.subr.bf16.mxu0 0
        %983 = vmatpush1.bf16.msra.mxu0 0
        %984 = vmatprep.subr.bf16.mxu0 0
        %985 = vmatpush1.bf16.msra.mxu0 0
        %986 = vmatprep.subr.bf16.mxu0 0
        %987 = vmatpush1.bf16.msra.mxu0 0
        %988 = vmatprep.subr.bf16.mxu0 0
        %989 = vmatpush1.bf16.msra.mxu0 0
        %990 = vmatprep.subr.bf16.mxu0 0
        %991 = vmatpush1.bf16.msra.mxu0 0
        %992 = vmatprep.subr.bf16.mxu0 0
        %993 = vmatpush1.bf16.msra.mxu0 0
        %994 = vmatprep.subr.bf16.mxu0 0
        %995 = vmatpush1.bf16.msra.mxu0 0
        %996 = vmatprep.subr.bf16.mxu0 0
        %997 = vmatpush1.bf16.msra.mxu0 0
        %998 = vmatprep.subr.bf16.mxu0 0
        %999 = vmatpush1.bf16.msra.mxu0 0
        %1000 = vmatprep.subr.bf16.mxu0 0
        %1001 = vmatpush1.bf16.msra.mxu0 0
        %1002 = vmatprep.subr.bf16.mxu0 0
        %1003 = vmatpush1.bf16.msra.mxu0 0
        %1004 = vmatprep.subr.bf16.mxu0 0
        %1005 = vmatpush1.bf16.msra.mxu0 0
        %1006 = vmatprep.subr.bf16.mxu0 0
        %1007 = vmatpush1.bf16.msra.mxu0 0
        %1008 = vmatprep.subr.bf16.mxu0 0
        %1009 = vmatpush1.bf16.msra.mxu0 0
        %1010 = vmatprep.mubr.bf16.mxu0 0
        %1011 = vmatmul.mubr.bf16.gmra.mrb[0].mxu0 %v976
        %v1012 = vpop.f32.mrb[0].mxu0
        %v1013 = vadd.f32 0.0, %v1012
        %v1014 = vpop.f32.mrb[0].mxu0
        %v1015 = vpop.f32.mrb[0].mxu0
        %v1016 = vpop.f32.mrb[0].mxu0
        %1017 = vdwg.mxu0
        %v1018 = vpack.c.bf16 %v1013, %v1013
        %v1020 = vunpack.c.l.b16 %v1018
        %v1021 = vpack.c.b16 %v1020, %v1020
        %1022 = vrot.lane.b32.xlu0 %v1021, 8
        %v1023 = vpop.permute.xlu0 %1022
        %vm1025 = vcmask 126016
        %1026 = vst.msk [vmem:[#allocation2] sm:$0xf] %vm1025, %v1023
        %1027 = vrot.lane.b32.xlu0 %v793, 112
        %v1028 = vpop.permute.xlu0 %1027
        %1029 = vrot.lane.b32.xlu0 %v794, 112
        %v1030 = vpop.permute.xlu0 %1029
        %v1032 = vsel %vm796, %v1028, 0
        %v1035 = vsel %vm796, %v1030, 0
        %1037 = vmatprep.subr.bf16.mxu0 0
        %1038 = vmatpush1.bf16.xpose.msra.mxu0 %v1035
        %1039 = vmatprep.subr.bf16.mxu0 0
        %1040 = vmatpush1.bf16.xpose.msra.mxu0 0
        %1041 = vmatprep.subr.bf16.mxu0 0
        %1042 = vmatpush1.bf16.xpose.msra.mxu0 0
        %1043 = vmatprep.subr.bf16.mxu0 0
        %1044 = vmatpush1.bf16.xpose.msra.mxu0 0
        %1045 = vmatprep.subr.bf16.mxu0 0
        %1046 = vmatpush1.bf16.xpose.msra.mxu0 0
        %1047 = vmatprep.subr.bf16.mxu0 0
        %1048 = vmatpush1.bf16.xpose.msra.mxu0 0
        %1049 = vmatprep.subr.bf16.mxu0 0
        %1050 = vmatpush1.bf16.xpose.msra.mxu0 0
        %1051 = vmatprep.subr.bf16.mxu0 0
        %1052 = vmatpush1.bf16.xpose.msra.mxu0 0
        %1053 = vmatprep.subr.bf16.mxu0 0
        %1054 = vmatpush1.bf16.xpose.msra.mxu0 0
        %1055 = vmatprep.subr.bf16.mxu0 0
        %1056 = vmatpush1.bf16.xpose.msra.mxu0 0
        %1057 = vmatprep.subr.bf16.mxu0 0
        %1058 = vmatpush1.bf16.xpose.msra.mxu0 0
        %1059 = vmatprep.subr.bf16.mxu0 0
        %1060 = vmatpush1.bf16.xpose.msra.mxu0 0
        %1061 = vmatprep.subr.bf16.mxu0 0
        %1062 = vmatpush1.bf16.xpose.msra.mxu0 0
        %1063 = vmatprep.subr.bf16.mxu0 0
        %1064 = vmatpush1.bf16.xpose.msra.mxu0 0
        %1065 = vmatprep.subr.bf16.mxu0 0
        %1066 = vmatpush1.bf16.xpose.msra.mxu0 0
        %1067 = vmatprep.subr.bf16.mxu0 0
        %1068 = vmatpush1.bf16.xpose.msra.mxu0 0
        %1069 = vmatprep.mubr.bf16.mxu0 0
        %1070 = vmatmul.mubr.bf16.gmra.mrb[0].mxu0 %v1032
        %v1071 = vpop.f32.mrb[0].mxu0
        %v1072 = vadd.f32 0.0, %v1071
        %v1073 = vpop.f32.mrb[0].mxu0
        %v1074 = vpop.f32.mrb[0].mxu0
        %v1075 = vpop.f32.mrb[0].mxu0
        %1076 = vdwg.mxu0
        %v1077 = vsel %vm792, -1e+30, %v1072
        %v1078 = vsel %vm844, %v1077, -inf
        %1079 = vmax.xlane.f32.xlu0 %v1078
        %v1080 = vpop.xlane.xlu0 %1079
        %v1081 = vsub.f32 %v1077, %v1080
        %v1082 = vmul.f32 %v1081, 1.442695
        %v1083 = vpow.pop %v1082
        %v1084 = vsel %vm844, %v1083, 0.0
        %1085 = vadd.xlane.f32.xlu0 %v1084
        %v1086 = vpop.xlane.xlu0 %1085
        %v1087 = vrcp.pop %v1086
        %v1088 = vmul.f32 %v1083, %v1087
        %v1089 = vpack.c.bf16 %v1088, %v1088
        %1090 = vrot.lane.b32.xlu0 %v795, 48
        %v1091 = vpop.permute.xlu0 %1090
        %v1094 = vsel %vm844, %v1089, 0
        %1096 = vmatprep.subr.bf16.mxu0 0
        %1097 = vmatpush1.bf16.msra.mxu0 %v1091
        %1098 = vmatprep.subr.bf16.mxu0 0
        %1099 = vmatpush1.bf16.msra.mxu0 0
        %1100 = vmatprep.subr.bf16.mxu0 0
        %1101 = vmatpush1.bf16.msra.mxu0 0
        %1102 = vmatprep.subr.bf16.mxu0 0
        %1103 = vmatpush1.bf16.msra.mxu0 0
        %1104 = vmatprep.subr.bf16.mxu0 0
        %1105 = vmatpush1.bf16.msra.mxu0 0
        %1106 = vmatprep.subr.bf16.mxu0 0
        %1107 = vmatpush1.bf16.msra.mxu0 0
        %1108 = vmatprep.subr.bf16.mxu0 0
        %1109 = vmatpush1.bf16.msra.mxu0 0
        %1110 = vmatprep.subr.bf16.mxu0 0
        %1111 = vmatpush1.bf16.msra.mxu0 0
        %1112 = vmatprep.subr.bf16.mxu0 0
        %1113 = vmatpush1.bf16.msra.mxu0 0
        %1114 = vmatprep.subr.bf16.mxu0 0
        %1115 = vmatpush1.bf16.msra.mxu0 0
        %1116 = vmatprep.subr.bf16.mxu0 0
        %1117 = vmatpush1.bf16.msra.mxu0 0
        %1118 = vmatprep.subr.bf16.mxu0 0
        %1119 = vmatpush1.bf16.msra.mxu0 0
        %1120 = vmatprep.subr.bf16.mxu0 0
        %1121 = vmatpush1.bf16.msra.mxu0 0
        %1122 = vmatprep.subr.bf16.mxu0 0
        %1123 = vmatpush1.bf16.msra.mxu0 0
        %1124 = vmatprep.subr.bf16.mxu0 0
        %1125 = vmatpush1.bf16.msra.mxu0 0
        %1126 = vmatprep.subr.bf16.mxu0 0
        %1127 = vmatpush1.bf16.msra.mxu0 0
        %1128 = vmatprep.mubr.bf16.mxu0 0
        %1129 = vmatmul.mubr.bf16.gmra.mrb[0].mxu0 %v1094
        %v1130 = vpop.f32.mrb[0].mxu0
        %v1131 = vadd.f32 0.0, %v1130
        %v1132 = vpop.f32.mrb[0].mxu0
        %v1133 = vpop.f32.mrb[0].mxu0
        %v1134 = vpop.f32.mrb[0].mxu0
        %1135 = vdwg.mxu0
        %v1136 = vpack.c.bf16 %v1131, %v1131
        %v1138 = vunpack.c.l.b16 %v1136
        %v1139 = vpack.c.b16 %v1138, %v1138
        %1140 = vrot.lane.b32.xlu0 %v1139, 16
        %v1141 = vpop.permute.xlu0 %1140
        %vm1143 = vcmask 191616
        %1144 = vst.msk [vmem:[#allocation2] sm:$0xf] %vm1143, %v1141
        %1145 = vrot.lane.b32.xlu0 %v793, 104
        %v1146 = vpop.permute.xlu0 %1145
        %1147 = vrot.lane.b32.xlu0 %v794, 104
        %v1148 = vpop.permute.xlu0 %1147
        %v1150 = vsel %vm796, %v1146, 0
        %v1153 = vsel %vm796, %v1148, 0
        %1155 = vmatprep.subr.bf16.mxu0 0
        %1156 = vmatpush1.bf16.xpose.msra.mxu0 %v1153
        %1157 = vmatprep.subr.bf16.mxu0 0
        %1158 = vmatpush1.bf16.xpose.msra.mxu0 0
        %1159 = vmatprep.subr.bf16.mxu0 0
        %1160 = vmatpush1.bf16.xpose.msra.mxu0 0
        %1161 = vmatprep.subr.bf16.mxu0 0
        %1162 = vmatpush1.bf16.xpose.msra.mxu0 0
        %1163 = vmatprep.subr.bf16.mxu0 0
        %1164 = vmatpush1.bf16.xpose.msra.mxu0 0
        %1165 = vmatprep.subr.bf16.mxu0 0
        %1166 = vmatpush1.bf16.xpose.msra.mxu0 0
        %1167 = vmatprep.subr.bf16.mxu0 0
        %1168 = vmatpush1.bf16.xpose.msra.mxu0 0
        %1169 = vmatprep.subr.bf16.mxu0 0
        %1170 = vmatpush1.bf16.xpose.msra.mxu0 0
        %1171 = vmatprep.subr.bf16.mxu0 0
        %1172 = vmatpush1.bf16.xpose.msra.mxu0 0
        %1173 = vmatprep.subr.bf16.mxu0 0
        %1174 = vmatpush1.bf16.xpose.msra.mxu0 0
        %1175 = vmatprep.subr.bf16.mxu0 0
        %1176 = vmatpush1.bf16.xpose.msra.mxu0 0
        %1177 = vmatprep.subr.bf16.mxu0 0
        %1178 = vmatpush1.bf16.xpose.msra.mxu0 0
        %1179 = vmatprep.subr.bf16.mxu0 0
        %1180 = vmatpush1.bf16.xpose.msra.mxu0 0
        %1181 = vmatprep.subr.bf16.mxu0 0
        %1182 = vmatpush1.bf16.xpose.msra.mxu0 0
        %1183 = vmatprep.subr.bf16.mxu0 0
        %1184 = vmatpush1.bf16.xpose.msra.mxu0 0
        %1185 = vmatprep.subr.bf16.mxu0 0
        %1186 = vmatpush1.bf16.xpose.msra.mxu0 0
        %1187 = vmatprep.mubr.bf16.mxu0 0
        %1188 = vmatmul.mubr.bf16.gmra.mrb[0].mxu0 %v1150
        %v1189 = vpop.f32.mrb[0].mxu0
        %v1190 = vadd.f32 0.0, %v1189
        %v1191 = vpop.f32.mrb[0].mxu0
        %v1192 = vpop.f32.mrb[0].mxu0
        %v1193 = vpop.f32.mrb[0].mxu0
        %1194 = vdwg.mxu0
        %v1195 = vsel %vm792, -1e+30, %v1190
        %v1196 = vsel %vm844, %v1195, -inf
        %1197 = vmax.xlane.f32.xlu0 %v1196
        %v1198 = vpop.xlane.xlu0 %1197
        %v1199 = vsub.f32 %v1195, %v1198
        %v1200 = vmul.f32 %v1199, 1.442695
        %v1201 = vpow.pop %v1200
        %v1202 = vsel %vm844, %v1201, 0.0
        %1203 = vadd.xlane.f32.xlu0 %v1202
        %v1204 = vpop.xlane.xlu0 %1203
        %v1205 = vrcp.pop %v1204
        %v1206 = vmul.f32 %v1201, %v1205
        %v1207 = vpack.c.bf16 %v1206, %v1206
        %1208 = vrot.lane.b32.xlu0 %v795, 40
        %v1209 = vpop.permute.xlu0 %1208
        %v1212 = vsel %vm844, %v1207, 0
        %1214 = vmatprep.subr.bf16.mxu0 0
        %1215 = vmatpush1.bf16.msra.mxu0 %v1209
        %1216 = vmatprep.subr.bf16.mxu0 0
        %1217 = vmatpush1.bf16.msra.mxu0 0
        %1218 = vmatprep.subr.bf16.mxu0 0
        %1219 = vmatpush1.bf16.msra.mxu0 0
        %1220 = vmatprep.subr.bf16.mxu0 0
        %1221 = vmatpush1.bf16.msra.mxu0 0
        %1222 = vmatprep.subr.bf16.mxu0 0
        %1223 = vmatpush1.bf16.msra.mxu0 0
        %1224 = vmatprep.subr.bf16.mxu0 0
        %1225 = vmatpush1.bf16.msra.mxu0 0
        %1226 = vmatprep.subr.bf16.mxu0 0
        %1227 = vmatpush1.bf16.msra.mxu0 0
        %1228 = vmatprep.subr.bf16.mxu0 0
        %1229 = vmatpush1.bf16.msra.mxu0 0
        %1230 = vmatprep.subr.bf16.mxu0 0
        %1231 = vmatpush1.bf16.msra.mxu0 0
        %1232 = vmatprep.subr.bf16.mxu0 0
        %1233 = vmatpush1.bf16.msra.mxu0 0
        %1234 = vmatprep.subr.bf16.mxu0 0
        %1235 = vmatpush1.bf16.msra.mxu0 0
        %1236 = vmatprep.subr.bf16.mxu0 0
        %1237 = vmatpush1.bf16.msra.mxu0 0
        %1238 = vmatprep.subr.bf16.mxu0 0
        %1239 = vmatpush1.bf16.msra.mxu0 0
        %1240 = vmatprep.subr.bf16.mxu0 0
        %1241 = vmatpush1.bf16.msra.mxu0 0
        %1242 = vmatprep.subr.bf16.mxu0 0
        %1243 = vmatpush1.bf16.msra.mxu0 0
        %1244 = vmatprep.subr.bf16.mxu0 0
        %1245 = vmatpush1.bf16.msra.mxu0 0
        %1246 = vmatprep.mubr.bf16.mxu0 0
        %1247 = vmatmul.mubr.bf16.gmra.mrb[0].mxu0 %v1212
        %v1248 = vpop.f32.mrb[0].mxu0
        %v1249 = vadd.f32 0.0, %v1248
        %v1250 = vpop.f32.mrb[0].mxu0
        %v1251 = vpop.f32.mrb[0].mxu0
        %v1252 = vpop.f32.mrb[0].mxu0
        %1253 = vdwg.mxu0
        %v1254 = vpack.c.bf16 %v1249, %v1249
        %v1256 = vunpack.c.l.b16 %v1254
        %v1257 = vpack.c.b16 %v1256, %v1256
        %1258 = vrot.lane.b32.xlu0 %v1257, 24
        %v1259 = vpop.permute.xlu0 %1258
        %vm1261 = vcmask 257216
        %1262 = vst.msk [vmem:[#allocation2] sm:$0xf] %vm1261, %v1259
        %v1263 = vld [vmem:[#allocation2] sm:$0xf]
        %v1264 = vld [vmem:[#allocation9] sm:$0xf]
        %v1265 = vld [vmem:[#allocation9 + $0x4] sm:$0xf]
        %v1266 = vld [vmem:[#allocation9 + $0x8] sm:$0xf]
        %v1267 = vld [vmem:[#allocation9 + $0xc] sm:$0xf]
        %v1272 = vunpack.c.l.b16 %v1264
        %v1273 = vunpack.c.l.b16 %v1265
        %v1274 = vunpack.c.l.b16 %v1266
        %v1275 = vunpack.c.l.b16 %v1267
        %v1276 = vpack.c.b16 %v1273, %v1272
        %v1277 = vpack.c.b16 %v1275, %v1274
        %v1281 = vsel %vm590, %v1263, 0
        %1283 = vmatprep.subr.bf16.mxu0 0
        %1284 = vmatpush1.bf16.msra.mxu0 %v1276
        %1285 = vmatprep.subr.bf16.mxu0 0
        %1286 = vmatpush1.bf16.msra.mxu0 %v1277
        %1287 = vmatprep.subr.bf16.mxu0 0
        %1288 = vmatpush1.bf16.msra.mxu0 0
        %1289 = vmatprep.subr.bf16.mxu0 0
        %1290 = vmatpush1.bf16.msra.mxu0 0
        %1291 = vmatprep.subr.bf16.mxu0 0
        %1292 = vmatpush1.bf16.msra.mxu0 0
        %1293 = vmatprep.subr.bf16.mxu0 0
        %1294 = vmatpush1.bf16.msra.mxu0 0
        %1295 = vmatprep.subr.bf16.mxu0 0
        %1296 = vmatpush1.bf16.msra.mxu0 0
        %1297 = vmatprep.subr.bf16.mxu0 0
        %1298 = vmatpush1.bf16.msra.mxu0 0
        %1299 = vmatprep.subr.bf16.mxu0 0
        %1300 = vmatpush1.bf16.msra.mxu0 0
        %1301 = vmatprep.subr.bf16.mxu0 0
        %1302 = vmatpush1.bf16.msra.mxu0 0
        %1303 = vmatprep.subr.bf16.mxu0 0
        %1304 = vmatpush1.bf16.msra.mxu0 0
        %1305 = vmatprep.subr.bf16.mxu0 0
        %1306 = vmatpush1.bf16.msra.mxu0 0
        %1307 = vmatprep.subr.bf16.mxu0 0
        %1308 = vmatpush1.bf16.msra.mxu0 0
        %1309 = vmatprep.subr.bf16.mxu0 0
        %1310 = vmatpush1.bf16.msra.mxu0 0
        %1311 = vmatprep.subr.bf16.mxu0 0
        %1312 = vmatpush1.bf16.msra.mxu0 0
        %1313 = vmatprep.subr.bf16.mxu0 0
        %1314 = vmatpush1.bf16.msra.mxu0 0
        %1315 = vmatprep.mubr.bf16.mxu0 0
        %1316 = vmatmul.mubr.bf16.gmra.mrb[0].mxu0 %v1281
        %v1317 = vpop.f32.mrb[0].mxu0
        %v1318 = vadd.f32 0.0, %v1317
        %v1319 = vpop.f32.mrb[0].mxu0
        %v1320 = vpop.f32.mrb[0].mxu0
        %v1321 = vpop.f32.mrb[0].mxu0
        %1322 = vdwg.mxu0
        %v1323 = vadd.f32 %v616, %v1318
        %v1324 = vmul.f32 %v1323, %v1323
        %v1325 = vsel %vm590, %v1324, 0.0
        %1326 = vadd.xlane.f32.xlu0 %v1325
        %v1327 = vpop.xlane.xlu0 %1326
        %v1328 = vmul.f32 %v1327, %v597
        %v1329 = vadd.f32 %v1328, 1e-05
        %v1330 = vrsqrt.pop %v1329
        %v1331 = vmul.f32 %v1323, %v1330
        %v1332 = vld [vmem:[%s9] sm:$0x1]
        %v1334 = vlaneseq
        %v1335 = vshrl.u32 %v1334, 7
        %v1336 = vsub.s32 0, %v1335
        %v1337 = vrot.slane %v1332, %v1336
        %v1339 = vmul.f32 %v1331, %v1337
        %v1340 = vpack.c.bf16 %v1339, %v1339
        %v1341 = vld [vmem:[%s10] sm:$0xf]
        %v1342 = vld [vmem:[%s10 + $0x4] sm:$0xf]
        %v1343 = vld [vmem:[%s10 + $0x8] sm:$0xf]
        %v1344 = vld [vmem:[%s10 + $0xc] sm:$0xf]
        %v1349 = vunpack.c.l.b16 %v1341
        %v1350 = vunpack.c.l.b16 %v1342
        %v1351 = vunpack.c.l.b16 %v1343
        %v1352 = vunpack.c.l.b16 %v1344
        %v1353 = vpack.c.b16 %v1350, %v1349
        %v1354 = vpack.c.b16 %v1352, %v1351
        %v1358 = vsel %vm590, %v1340, 0
        %1360 = vmatprep.subr.bf16.mxu0 0
        %1361 = vmatpush1.bf16.msra.mxu0 %v1353
        %1362 = vmatprep.subr.bf16.mxu0 0
        %1363 = vmatpush1.bf16.msra.mxu0 %v1354
        %1364 = vmatprep.subr.bf16.mxu0 0
        %1365 = vmatpush1.bf16.msra.mxu0 0
        %1366 = vmatprep.subr.bf16.mxu0 0
        %1367 = vmatpush1.bf16.msra.mxu0 0
        %1368 = vmatprep.subr.bf16.mxu0 0
        %1369 = vmatpush1.bf16.msra.mxu0 0
        %1370 = vmatprep.subr.bf16.mxu0 0
        %1371 = vmatpush1.bf16.msra.mxu0 0
        %1372 = vmatprep.subr.bf16.mxu0 0
        %1373 = vmatpush1.bf16.msra.mxu0 0
        %1374 = vmatprep.subr.bf16.mxu0 0
        %1375 = vmatpush1.bf16.msra.mxu0 0
        %1376 = vmatprep.subr.bf16.mxu0 0
        %1377 = vmatpush1.bf16.msra.mxu0 0
        %1378 = vmatprep.subr.bf16.mxu0 0
        %1379 = vmatpush1.bf16.msra.mxu0 0
        %1380 = vmatprep.subr.bf16.mxu0 0
        %1381 = vmatpush1.bf16.msra.mxu0 0
        %1382 = vmatprep.subr.bf16.mxu0 0
        %1383 = vmatpush1.bf16.msra.mxu0 0
        %1384 = vmatprep.subr.bf16.mxu0 0
        %1385 = vmatpush1.bf16.msra.mxu0 0
        %1386 = vmatprep.subr.bf16.mxu0 0
        %1387 = vmatpush1.bf16.msra.mxu0 0
        %1388 = vmatprep.subr.bf16.mxu0 0
        %1389 = vmatpush1.bf16.msra.mxu0 0
        %1390 = vmatprep.subr.bf16.mxu0 0
        %1391 = vmatpush1.bf16.msra.mxu0 0
        %1392 = vmatprep.mubr.bf16.mxu0 0
        %1393 = vmatmul.mubr.bf16.gmra.mrb[0].mxu0 %v1358
        %v1394 = vpop.f32.mrb[0].mxu0
        %v1395 = vadd.f32 0.0, %v1394
        %v1396 = vpop.f32.mrb[0].mxu0
        %v1397 = vpop.f32.mrb[0].mxu0
        %v1398 = vpop.f32.mrb[0].mxu0
        %1399 = vdwg.mxu0
        %v1400 = vxor.u32 %v1395, 2147483648
        %v1401 = vmul.f32 %v1400, 1.442695
        %v1402 = vpow.pop %v1401
        %v1403 = vadd.f32 %v1402, 1.0
        %v1404 = vrcp.pop %v1403
        %v1405 = vmul.f32 1.0, %v1404
        %v1406 = vmul.f32 %v1395, %v1405
        %1408 = vrot.lane.b32.xlu0 %v1395, 96
        %v1409 = vpop.permute.xlu0 %1408
        %v1411 = vmul.f32 %v1406, %v1409
        %v1412 = vpack.c.bf16 %v1411, %v1411
        %v1413 = vld [vmem:[#allocation14] sm:$0xf]
        %v1414 = vld [vmem:[#allocation14 + $0x4] sm:$0xf]
        %v1415 = vld [vmem:[#allocation14 + $0x8] sm:$0xf]
        %v1416 = vld [vmem:[#allocation14 + $0xc] sm:$0xf]
        %v1421 = vunpack.c.l.b16 %v1413
        %v1422 = vunpack.c.l.b16 %v1414
        %v1423 = vunpack.c.l.b16 %v1415
        %v1424 = vunpack.c.l.b16 %v1416
        %v1425 = vpack.c.b16 %v1422, %v1421
        %v1426 = vpack.c.b16 %v1424, %v1423
        %v1430 = vsel %vm590, %v1412, 0
        %1432 = vmatprep.subr.bf16.mxu0 0
        %1433 = vmatpush1.bf16.msra.mxu0 %v1425
        %1434 = vmatprep.subr.bf16.mxu0 0
        %1435 = vmatpush1.bf16.msra.mxu0 %v1426
        %1436 = vmatprep.subr.bf16.mxu0 0
        %1437 = vmatpush1.bf16.msra.mxu0 0
        %1438 = vmatprep.subr.bf16.mxu0 0
        %1439 = vmatpush1.bf16.msra.mxu0 0
        %1440 = vmatprep.subr.bf16.mxu0 0
        %1441 = vmatpush1.bf16.msra.mxu0 0
        %1442 = vmatprep.subr.bf16.mxu0 0
        %1443 = vmatpush1.bf16.msra.mxu0 0
        %1444 = vmatprep.subr.bf16.mxu0 0
        %1445 = vmatpush1.bf16.msra.mxu0 0
        %1446 = vmatprep.subr.bf16.mxu0 0
        %1447 = vmatpush1.bf16.msra.mxu0 0
        %1448 = vmatprep.subr.bf16.mxu0 0
        %1449 = vmatpush1.bf16.msra.mxu0 0
        %1450 = vmatprep.subr.bf16.mxu0 0
        %1451 = vmatpush1.bf16.msra.mxu0 0
        %1452 = vmatprep.subr.bf16.mxu0 0
        %1453 = vmatpush1.bf16.msra.mxu0 0
        %1454 = vmatprep.subr.bf16.mxu0 0
        %1455 = vmatpush1.bf16.msra.mxu0 0
        %1456 = vmatprep.subr.bf16.mxu0 0
        %1457 = vmatpush1.bf16.msra.mxu0 0
        %1458 = vmatprep.subr.bf16.mxu0 0
        %1459 = vmatpush1.bf16.msra.mxu0 0
        %1460 = vmatprep.subr.bf16.mxu0 0
        %1461 = vmatpush1.bf16.msra.mxu0 0
        %1462 = vmatprep.subr.bf16.mxu0 0
        %1463 = vmatpush1.bf16.msra.mxu0 0
        %1464 = vmatprep.mubr.bf16.mxu0 0
        %1465 = vmatmul.mubr.bf16.gmra.mrb[0].mxu0 %v1430
        %v1466 = vpop.f32.mrb[0].mxu0
        %v1467 = vadd.f32 %v1323, %v1466
        %v1468 = vpop.f32.mrb[0].mxu0
        %v1469 = vpop.f32.mrb[0].mxu0
        %v1470 = vpop.f32.mrb[0].mxu0
        %1471 = vdwg.mxu0
        %1472 = vst.msk [vmem:[%s579] sm:$0xff] %vm590, %v1467
        %s1473 = sand.u32 %s321, 1
        %s1474 = scalar_lea.sflag [#allocation5], %s1473
        %s1475 = sand.u32 %s321, 1
        %s1476 = smul.addr %s1475, 8
        %s1477 = scalar_lea.vmem [#allocation16], %s1476
        // Predicated region
        $region101: #{tpu_custom_call.1} parent=67 // pred_check
          %p1478 = pneg %p331
        $region102: #{tpu_custom_call.1} parent=67 // pred_check_branch
          %1480 = sbr.rel (%p1478) target = $region104
        $region103: #{tpu_custom_call.1} parent=67 // pred_region
          %s1482 = ssub.s32 128, 128
          %1483 = vsyncadd %s1474, %s1482
          %s1484 = smul.addr %s36, 2
          %s1485 = sadd.s32 %s37, %s1484
          %s1486 = smul.addr %s1485, 128
          %s1487 = scalar_lea.hbm %s12, %s1486
          %s1489 = sshll.u32 %s1477, 4
          %s1490 = int_to_ptr.vmem [resolvable:$true] %s1489
          %1492 = dma.vmem_to_hbm [thread:$0]  %s1490, 128, %s1487, %s1474
        $region104: #{tpu_custom_call.1} parent=67 // pred_fallthru
          _
      $region68: #{tpu_custom_call.1} parent=5 // pred_fallthru
        _
      %p1493 = scmp.le.s32.totalorder 2, %s27
      // Predicated region
      $region105: #{tpu_custom_call.1} parent=5 // pred_check
        %p1494 = pneg %p1493
      $region106: #{tpu_custom_call.1} parent=5 // pred_check_branch
        %1496 = sbr.rel (%p1494) target = $region108
      $region107: #{tpu_custom_call.1} parent=5 // pred_region
        %s1497 = ssub.s32 %s27, 2
        // Predicated region
        $region109: #{tpu_custom_call.1} parent=107 // pred_check
          %p1498 = pneg %p337
        $region110: #{tpu_custom_call.1} parent=107 // pred_check_branch
          %1500 = sbr.rel (%p1498) target = $region112
        $region111: #{tpu_custom_call.1} parent=107 // pred_region
          %s1501 = sand.u32 %s322, 1
          %s1502 = scalar_lea.sflag [#allocation5], %s1501
          %s1503 = sand.u32 %s322, 1
          %s1504 = smul.addr %s1503, 8
          %s1505 = scalar_lea.vmem [#allocation16], %s1504
          %1506 = dma.done %s1502, 128
        $region112: #{tpu_custom_call.1} parent=107 // pred_fallthru
          _
      $region108: #{tpu_custom_call.1} parent=5 // pred_fallthru
        _
    $region6: #{tpu_custom_call.1} parent=1 // loop_footer
      %s31 = sadd.s32 1, %s27
    $region7: #{tpu_custom_call.1} parent=1 // loop_footer_branch
      %26 = sbr.rel target = $region3
    $region8: #{tpu_custom_call.1} parent=1 // loop_exit
      _
    %1507 = vsyncpa [#allocation4], 1
    %s1508 = scalar_lea.sflag [#allocation4], 1
    %1509 = vsyncpa %s1508, 1
    %1510 = vsyncpa [#allocation7], 1
    %1511 = vsyncpa [#allocation10], 1
    %1512 = vsyncpa [#allocation15], 1
    %1513 = vsyncpa [#allocation5], 1
    %s1514 = scalar_lea.sflag [#allocation5], 1
    %1515 = vsyncpa %s1514, 1

</llo_original>
